<compile_context>
chip_gen: v5e
topology: v5e:2x2
jax: 0.10.0
libtpu: 0.0.40
codegen_flags: <defaults>
</compile_context>

<pallas_src>
import math
import jax
import jax.numpy as jnp
from jax.experimental import pallas as pl
from jax.experimental.pallas import tpu as pltpu

# ---- config (stand-ins for args / env) --------------------------------------
D_MODEL  = 32     # args.d_model
NHEAD    = 4      # args.nhead (irrelevant at seq len 1 -- attention collapses)
LAYERS   = 2      # args.layers
DIM_F    = 64     # args.dim_f
DIM_OUT  = 4      # env.action_space.n
OBS_DIM  = 8
GOAL_DIM = 5
EPS      = 1e-5   # nn.LayerNorm default
LANE     = 128    # slab lane width
IN_PAD   = 16     # obs(8)+goal(5) zero-padded to a whole sublane multiple
ROW_ALIGN = 16    # 16-row alignment keeps bf16 (16,128) sublane packing intact


def _align(n, m):
    return -(-n // m) * m


# ---- raw (PyTorch-equivalent) parameters ------------------------------------
# All linear weights are stored pre-transposed as [in, out] (PyTorch keeps
# [out, in]); biases / LN params are 1-D [features].
def init_raw_params(key):
    ks = iter(jax.random.split(key, 128))

    def lin(din, dout):
        bd = 1.0 / math.sqrt(din)
        w = jax.random.uniform(next(ks), (din, dout), jnp.float32, -bd, bd)
        b = jax.random.uniform(next(ks), (dout,), jnp.float32, -bd, bd)
        return (w, b)

    def lnp():
        # non-trivial affine so the LN-folding optimizations are actually exercised
        g = 1.0 + 0.1 * jax.random.normal(next(ks), (D_MODEL,), jnp.float32)
        b = 0.1 * jax.random.normal(next(ks), (D_MODEL,), jnp.float32)
        return (g, b)

    bd_h = 1.0 / math.sqrt(D_MODEL)
    raw = {
        'state': lin(OBS_DIM, D_MODEL),                                  # state_emb
        'token': jax.random.normal(next(ks), (D_MODEL,), jnp.float32),   # token_emb.weight
        # TODO(synk): GatedFusion is not defined in the provided source; a
        # standard sigmoid-gated fusion (project 13-d (obs||goal) to H, gate,
        # convex-combine) is implemented here.
        'gate_proj': lin(OBS_DIM + GOAL_DIM, D_MODEL),
        'gate_ws': jax.random.uniform(next(ks), (D_MODEL, D_MODEL), jnp.float32, -bd_h, bd_h),
        'gate_wg': jax.random.uniform(next(ks), (D_MODEL, D_MODEL), jnp.float32, -bd_h, bd_h),
        'gate_b': jax.random.uniform(next(ks), (D_MODEL,), jnp.float32, -bd_h, bd_h),
        'enc': [], 'dec': [],
    }
    for _ in range(LAYERS):
        raw['enc'].append(dict(v=lin(D_MODEL, D_MODEL), o=lin(D_MODEL, D_MODEL),
                               ln1=lnp(), f1=lin(D_MODEL, DIM_F),
                               f2=lin(DIM_F, D_MODEL), ln2=lnp()))
    raw['enc_norm'] = lnp()
    for _ in range(LAYERS):
        raw['dec'].append(dict(v=lin(D_MODEL, D_MODEL), o=lin(D_MODEL, D_MODEL), ln1=lnp(),
                               cv=lin(D_MODEL, D_MODEL), co=lin(D_MODEL, D_MODEL), ln2=lnp(),
                               f1=lin(D_MODEL, DIM_F), f2=lin(DIM_F, D_MODEL), ln3=lnp()))
    raw['dec_norm'] = lnp()
    raw['out'] = lin(D_MODEL, DIM_OUT)
    # NOTE: goal_emb (Linear(5, d_model)) is dead code in the reference forward
    # (its result is overwritten by einops.pack), so it is not materialized.
    return raw


# ---- pure-JAX reference (unfolded math; seq=1 attention collapse only) ------
def forward_ref(obs, goal, raw):
    def linear(x, p):
        w, b = p
        return x @ w + b

    def ln(x, p):
        g, b = p
        mu = jnp.mean(x, -1, keepdims=True)
        var = jnp.mean(jnp.square(x - mu), -1, keepdims=True)
        return (x - mu) * jax.lax.rsqrt(var + EPS) * g + b

    s0 = linear(obs, raw['state'])
    gcat = jnp.concatenate([obs, goal], -1)
    gp = linear(gcat, raw['gate_proj'])
    z = jax.nn.sigmoid(s0 @ raw['gate_ws'] + gp @ raw['gate_wg'] + raw['gate_b'])
    x = z * s0 + (1.0 - z) * gp
    for e in raw['enc']:
        x = ln(x + linear(linear(x, e['v']), e['o']), e['ln1'])
        x = ln(x + linear(jax.nn.relu(linear(x, e['f1'])), e['f2']), e['ln2'])
    memory = ln(x, raw['enc_norm'])
    y = jnp.broadcast_to(raw['token'][None, :], s0.shape)
    for d in raw['dec']:
        y = ln(y + linear(linear(y, d['v']), d['o']), d['ln1'])
        y = ln(y + linear(linear(memory, d['cv']), d['co']), d['ln2'])
        y = ln(y + linear(jax.nn.relu(linear(y, d['f1'])), d['f2']), d['ln3'])
    y = ln(y, raw['dec_norm'])
    return linear(y, raw['out'])


# ---- host-side folding + slab packing ---------------------------------------
def pack_params(raw):
    assert 2 * D_MODEL <= LANE and LAYERS * D_MODEL <= LANE and DIM_F <= LANE

    w_entries, v_entries = [], []
    w_off = [0]

    def add_w(w):
        w = jnp.asarray(w, jnp.float32)
        off = w_off[0]
        w_entries.append((off, w))
        w_off[0] += _align(int(w.shape[0]), ROW_ALIGN)   # 16-aligned row offsets
        return (off, int(w.shape[0]), int(w.shape[1]))

    def add_v(v):
        v = jnp.asarray(v, jnp.float32).reshape(-1)
        idx = len(v_entries)
        v_entries.append(v)
        return (idx, int(v.shape[0]))

    def fold_vo(vp, op):                  # (x@Wv+bv)@Wo+bo == x@(Wv@Wo) + (bv@Wo+bo)
        vw, vb = vp
        ow, ob = op
        return vw @ ow, vb @ ow + ob

    L = {}
    H = D_MODEL

    # fused input projection: [obs | goal | pad] (16) -> [s0 | gp] (64)
    sw, sb = raw['state']                 # [8,32],[32]
    pw, pb = raw['gate_proj']             # [13,32],[32]
    win = jnp.zeros((IN_PAD, 2 * H), jnp.float32)
    win = win.at[:OBS_DIM, :H].set(sw)
    win = win.at[:OBS_DIM + GOAL_DIM, H:].set(pw)
    L['in_w'] = add_w(win)
    L['in_b'] = add_v(jnp.concatenate([sb, pb]))
    L['tok'] = add_v(raw['token'])
    # gate-matmul fusion: [s0 | gp] @ [Ws ; Wg]
    L['gate_w'] = add_w(jnp.concatenate([raw['gate_ws'], raw['gate_wg']], axis=0))
    L['gate_b'] = add_v(raw['gate_b'])

    L['enc'] = []
    for e in raw['enc']:
        aw, ab = fold_vo(e['v'], e['o'])
        L['enc'].append(dict(
            attn_w=add_w(aw), attn_b=add_v(ab),
            ln1g=add_v(e['ln1'][0]), ln1b=add_v(e['ln1'][1]),
            f1_w=add_w(e['f1'][0]), f1_b=add_v(e['f1'][1]),
            f2_w=add_w(e['f2'][0]), f2_b=add_v(e['f2'][1]),
            ln2g=add_v(e['ln2'][0]), ln2b=add_v(e['ln2'][1])))

    # encoder-final LN affine folded into each decoder cross-attn (memory is
    # only ever consumed by the cross-attn value projection at seq=1); the two
    # (all LAYERS) cross-attn projections share the same LHS, so lane-pack them
    # into a single [H, H*LAYERS] weight computed once.
    ge, be = raw['enc_norm']
    ca_ws, ca_bs = [], []
    for d in raw['dec']:
        w_vo, b_vo = fold_vo(d['cv'], d['co'])
        ca_ws.append(ge[:, None] * w_vo)
        ca_bs.append(be @ w_vo + b_vo)
    L['ca_w'] = add_w(jnp.concatenate(ca_ws, axis=1))     # [H, H*LAYERS]
    L['ca_b'] = add_v(jnp.concatenate(ca_bs))             # [H*LAYERS]

    L['dec'] = []
    for d in raw['dec']:
        saw, sab = fold_vo(d['v'], d['o'])
        L['dec'].append(dict(
            sa_w=add_w(saw), sa_b=add_v(sab),
            ln1g=add_v(d['ln1'][0]), ln1b=add_v(d['ln1'][1]),
            ln2g=add_v(d['ln2'][0]), ln2b=add_v(d['ln2'][1]),
            f1_w=add_w(d['f1'][0]), f1_b=add_v(d['f1'][1]),
            f2_w=add_w(d['f2'][0]), f2_b=add_v(d['f2'][1]),
            ln3g=add_v(d['ln3'][0]), ln3b=add_v(d['ln3'][1])))

    # decoder-final LN affine folded into the output head
    gd, bd = raw['dec_norm']
    ow, ob = raw['out']
    L['out_w'] = add_w(gd[:, None] * ow)
    L['out_b'] = add_v(bd @ ow + ob)

    W_ROWS = _align(w_off[0], ROW_ALIGN)
    wslab = jnp.zeros((W_ROWS, LANE), jnp.float32)
    for off, w in w_entries:
        wslab = wslab.at[off:off + w.shape[0], :w.shape[1]].set(w)
    V_ROWS = _align(len(v_entries), 8)
    vslab = jnp.zeros((V_ROWS, LANE), jnp.float32)
    for i, v in enumerate(v_entries):
        vslab = vslab.at[i, :v.shape[0]].set(v)
    return wslab, vslab, L


# ---- kernel ------------------------------------------------------------------
def make_kernel(L):
    def kernel(xin_ref, w_ref, v_ref, out_ref):
        wdt = w_ref.dtype                  # bf16 in production, f32 for validation

        def W(spec):                       # static slice out of the weight slab
            off, rin, rout = spec
            return w_ref[off:off + rin, 0:rout]

        def V(spec):                       # static row out of the (f32) vector slab
            idx, f = spec
            return v_ref[idx:idx + 1, 0:f]

        def linear(x, ws, bs):
            # cast LHS to slab dtype (no-op for f32 slab); f32 MXU accumulation
            return jnp.dot(x.astype(wdt), W(ws),
                           preferred_element_type=jnp.float32) + V(bs)

        def ln(x, gs, bs):
            mu = jnp.mean(x, axis=-1, keepdims=True)
            var = jnp.mean(jnp.square(x - mu), axis=-1, keepdims=True)
            return (x - mu) * jax.lax.rsqrt(var + EPS) * V(gs) + V(bs)

        def ln_noaffine(x):                # affine folded into the next linear
            mu = jnp.mean(x, axis=-1, keepdims=True)
            var = jnp.mean(jnp.square(x - mu), axis=-1, keepdims=True)
            return (x - mu) * jax.lax.rsqrt(var + EPS)

        xin = xin_ref[...]                 # [B, 16] = [obs | goal | 0-pad], f32
        B = xin.shape[0]

        # fused state_emb + gate_proj (one [B,16]@[16,64]), then fused gate matmul
        s0gp = linear(xin, L['in_w'], L['in_b'])                # [B, 2H] = [s0 | gp]
        z = jax.nn.sigmoid(linear(s0gp, L['gate_w'], L['gate_b']))
        s0 = s0gp[:, 0:D_MODEL]
        gp = s0gp[:, D_MODEL:2 * D_MODEL]
        x = gp + z * (s0 - gp)                                  # memory (seq squeezed)

        # ---- transformer encoder (post-LN, relu FFN, dropout=identity) ------
        for e in L['enc']:
            x = ln(x + linear(x, e['attn_w'], e['attn_b']), e['ln1g'], e['ln1b'])
            ff = linear(jnp.maximum(linear(x, e['f1_w'], e['f1_b']), 0.0),
                        e['f2_w'], e['f2_b'])
            x = ln(x + ff, e['ln2g'], e['ln2b'])
        memory = ln_noaffine(x)            # encoder-final affine folded into cross-attn

        # all decoder cross-attn projections share LHS `memory` -> one matmul
        ca_all = linear(memory, L['ca_w'], L['ca_b'])           # [B, H*LAYERS]

        # ---- transformer decoder ---------------------------------------------
        # layer-0 self-attention path is batch-invariant -> run it at [1, H]
        y = V(L['tok'])                    # [1, H]
        first = True
        for l, d in enumerate(L['dec']):
            y = ln(y + linear(y, d['sa_w'], d['sa_b']), d['ln1g'], d['ln1b'])
            if first:
                y = jnp.broadcast_to(y, (B, D_MODEL))           # [B, H]
                first = False
            ca = ca_all[:, l * D_MODEL:(l + 1) * D_MODEL]
            y = ln(y + ca, d['ln2g'], d['ln2b'])
            ff = linear(jnp.maximum(linear(y, d['f1_w'], d['f1_b']), 0.0),
                        d['f2_w'], d['f2_b'])
            y = ln(y + ff, d['ln3g'], d['ln3b'])
        y = ln_noaffine(y)                 # decoder-final affine folded into out head

        out_ref[...] = linear(y, L['out_w'], L['out_b'])
    return kernel


# ---- wrapper -----------------------------------------------------------------
def idm_ssl_forward(obs, goal, wslab, vslab, layout, block_rows=None):
    B = obs.shape[0]
    # einops.pack((obs, goal), 'b *') == flatten + concat along features; padded
    # to 16 columns so the fused input matmul weight is sublane-aligned.
    xin = jnp.concatenate([obs.reshape(B, -1), goal.reshape(B, -1)], axis=-1)
    xin = jnp.pad(xin, ((0, 0), (0, IN_PAD - xin.shape[1])))
    kernel = make_kernel(layout)
    vmem = pltpu.MemorySpace.VMEM

    if block_rows is None or block_rows >= B:
        # small batch: single block, 3 input DMAs total (xin + 2 slabs)
        return pl.pallas_call(
            kernel,
            out_shape=jax.ShapeDtypeStruct((B, DIM_OUT), jnp.float32),
            in_specs=[pl.BlockSpec(memory_space=vmem)] * 3,
            out_specs=pl.BlockSpec(memory_space=vmem),
        )(xin, wslab, vslab)

    # large batch: 1-D "parallel" grid over B; weight slabs keep a constant
    # block index so they stay resident in VMEM across grid steps, and the grid
    # shards across v7x's 2 TensorCores (use >=2 blocks there; on v5e/v6e prefer
    # the largest block_rows / single block to amortize per-step overhead).
    assert block_rows % 8 == 0 and B % block_rows == 0
    return pl.pallas_call(
        kernel,
        out_shape=jax.ShapeDtypeStruct((B, DIM_OUT), jnp.float32),
        grid_spec=pltpu.PrefetchScalarGridSpec(
            num_scalar_prefetch=0,
            grid=(B // block_rows,),
            in_specs=[
                pl.BlockSpec((block_rows, IN_PAD), lambda i: (i, 0)),
                pl.BlockSpec(wslab.shape, lambda i: (0, 0)),
                pl.BlockSpec(vslab.shape, lambda i: (0, 0)),
            ],
            out_specs=pl.BlockSpec((block_rows, DIM_OUT), lambda i: (i, 0)),
        ),
        compiler_params=pltpu.CompilerParams(dimension_semantics=("parallel",)),
    )(xin, wslab, vslab)


if __name__ == "__main__":
    key = jax.random.PRNGKey(0)
    k_obs, k_goal, k_par, k_obs2, k_goal2 = jax.random.split(key, 5)

    raw = init_raw_params(k_par)
    wslab_f32, vslab, layout = pack_params(raw)
    wslab_bf16 = wslab_f32.astype(jnp.bfloat16)      # production weight slab

    # small batch (act() path)
    B = 4
    obs = jax.random.normal(k_obs, (B, OBS_DIM), jnp.float32)
    goal = jax.random.normal(k_goal, (B, GOAL_DIM), jnp.float32)
    ref = forward_ref(obs, goal, raw)

    # structural check: f32 slab. Tolerance accounts for TPU default matmul
    # precision differences between XLA (reference) and Mosaic (kernel); the
    # folding itself is exact in f32.
    logits_f32 = idm_ssl_forward(obs, goal, wslab_f32, vslab, layout)
    jax.block_until_ready(logits_f32)
    assert logits_f32.shape == (B, DIM_OUT) and logits_f32.dtype == jnp.float32
    err_f32 = float(jnp.max(jnp.abs(logits_f32 - ref)))
    assert err_f32 < 1e-2, f"f32-slab kernel/reference mismatch: max abs err = {err_f32}"

    # production path: bf16 weight slab (bf16 operands, f32 accumulation)
    logits_bf = idm_ssl_forward(obs, goal, wslab_bf16, vslab, layout)
    jax.block_until_ready(logits_bf)
    err_bf = float(jnp.max(jnp.abs(logits_bf - ref)))
    assert err_bf < 1e-1, f"bf16-slab kernel/reference mismatch: max abs err = {err_bf}"

    # larger batch through the 1-D parallel grid: 2 blocks so v7x megacore
    # sharding engages; slabs stay resident across grid steps.
    B2 = 512
    obs2 = jax.random.normal(k_obs2, (B2, OBS_DIM), jnp.float32)
    goal2 = jax.random.normal(k_goal2, (B2, GOAL_DIM), jnp.float32)
    logits2 = idm_ssl_forward(obs2, goal2, wslab_bf16, vslab, layout, block_rows=256)
    jax.block_until_ready(logits2)
    ref2 = forward_ref(obs2, goal2, raw)
    err2 = float(jnp.max(jnp.abs(logits2 - ref2)))
    assert logits2.shape == (B2, DIM_OUT)
    assert err2 < 1e-1, f"gridded bf16 kernel/reference mismatch: max abs err = {err2}"

    print("KERNEL_OK")
</pallas_src>

<mosaic_0001>
module attributes {stable_mosaic.version = 11 : i64} {
  func.func @kernel(%arg0: memref<4x16xf32, #tpu.memory_space<vmem>>, %arg1: memref<656x128xf32, #tpu.memory_space<vmem>>, %arg2: memref<40x128xf32, #tpu.memory_space<vmem>>, %arg3: memref<4x4xf32, #tpu.memory_space<vmem>>) attributes {dimension_semantics = [], scalar_prefetch = 0 : i64, scratch_operands = 0 : i64, tpu.core_type = #tpu.core_type<tc>} {
    %c0 = arith.constant 0 : index
    %c0_0 = arith.constant 0 : index
    %0 = vector.load %arg0[%c0, %c0_0] : memref<4x16xf32, #tpu.memory_space<vmem>>, vector<4x16xf32>
    %c0_1 = arith.constant 0 : index
    %c0_2 = arith.constant 0 : index
    %1 = vector.load %arg1[%c0_1, %c0_2] : memref<656x128xf32, #tpu.memory_space<vmem>>, vector<16x64xf32>
    %cst = arith.constant dense<0.000000e+00> : vector<4x64xf32>
    %2 = tpu.matmul %0, %1, %cst {dimension_numbers = #tpu.dot_dimension_numbers<[1], [0], [0], [1], [0, 0, 1, 1], [], []>} : vector<4x16xf32>, vector<16x64xf32>, vector<4x64xf32> -> vector<4x64xf32>
    %c0_3 = arith.constant 0 : index
    %c0_4 = arith.constant 0 : index
    %3 = vector.load %arg2[%c0_3, %c0_4] : memref<40x128xf32, #tpu.memory_space<vmem>>, vector<1x64xf32>
    %4 = vector.broadcast %3 : vector<1x64xf32> to vector<4x64xf32>
    %5 = arith.addf %2, %4 : vector<4x64xf32>
    %c16 = arith.constant 16 : index
    %c0_5 = arith.constant 0 : index
    %6 = vector.load %arg1[%c16, %c0_5] : memref<656x128xf32, #tpu.memory_space<vmem>>, vector<64x32xf32>
    %cst_6 = arith.constant dense<0.000000e+00> : vector<4x32xf32>
    %7 = tpu.matmul %5, %6, %cst_6 {dimension_numbers = #tpu.dot_dimension_numbers<[1], [0], [0], [1], [0, 0, 1, 1], [], []>} : vector<4x64xf32>, vector<64x32xf32>, vector<4x32xf32> -> vector<4x32xf32>
    %c2 = arith.constant 2 : index
    %c0_7 = arith.constant 0 : index
    %8 = vector.load %arg2[%c2, %c0_7] : memref<40x128xf32, #tpu.memory_space<vmem>>, vector<1x32xf32>
    %9 = vector.broadcast %8 : vector<1x32xf32> to vector<4x32xf32>
    %10 = arith.addf %7, %9 : vector<4x32xf32>
    %11 = arith.negf %10 : vector<4x32xf32>
    %12 = math.exp %11 : vector<4x32xf32>
    %cst_8 = arith.constant 1.000000e+00 : f32
    %13 = vector.broadcast %cst_8 : f32 to vector<4x32xf32>
    %14 = arith.addf %13, %12 : vector<4x32xf32>
    %15 = arith.divf %13, %14 : vector<4x32xf32>
    %16 = vector.extract_strided_slice %5 {offsets = [0, 0], sizes = [4, 32], strides = [1, 1]} : vector<4x64xf32> to vector<4x32xf32>
    %17 = vector.extract_strided_slice %5 {offsets = [0, 32], sizes = [4, 32], strides = [1, 1]} : vector<4x64xf32> to vector<4x32xf32>
    %18 = arith.subf %16, %17 : vector<4x32xf32>
    %19 = arith.mulf %15, %18 : vector<4x32xf32>
    %20 = arith.addf %17, %19 : vector<4x32xf32>
    %c80 = arith.constant 80 : index
    %c0_9 = arith.constant 0 : index
    %21 = vector.load %arg1[%c80, %c0_9] : memref<656x128xf32, #tpu.memory_space<vmem>>, vector<32x32xf32>
    %cst_10 = arith.constant dense<0.000000e+00> : vector<4x32xf32>
    %22 = tpu.matmul %20, %21, %cst_10 {dimension_numbers = #tpu.dot_dimension_numbers<[1], [0], [0], [1], [0, 0, 1, 1], [], []>} : vector<4x32xf32>, vector<32x32xf32>, vector<4x32xf32> -> vector<4x32xf32>
    %c3 = arith.constant 3 : index
    %c0_11 = arith.constant 0 : index
    %23 = vector.load %arg2[%c3, %c0_11] : memref<40x128xf32, #tpu.memory_space<vmem>>, vector<1x32xf32>
    %24 = vector.broadcast %23 : vector<1x32xf32> to vector<4x32xf32>
    %25 = arith.addf %22, %24 : vector<4x32xf32>
    %26 = arith.addf %20, %25 : vector<4x32xf32>
    %cst_12 = arith.constant dense<0.000000e+00> : vector<4xf32>
    %27 = vector.multi_reduction <add>, %26, %cst_12 [1] : vector<4x32xf32> to vector<4xf32>
    %28 = vector.shape_cast %27 : vector<4xf32> to vector<4x1xf32>
    %cst_13 = arith.constant 3.200000e+01 : f32
    %29 = vector.broadcast %cst_13 : f32 to vector<4x1xf32>
    %30 = arith.divf %28, %29 : vector<4x1xf32>
    %31 = vector.broadcast %30 : vector<4x1xf32> to vector<4x32xf32>
    %32 = arith.subf %26, %31 : vector<4x32xf32>
    %33 = arith.mulf %32, %32 : vector<4x32xf32>
    %cst_14 = arith.constant dense<0.000000e+00> : vector<4xf32>
    %34 = vector.multi_reduction <add>, %33, %cst_14 [1] : vector<4x32xf32> to vector<4xf32>
    %35 = vector.shape_cast %34 : vector<4xf32> to vector<4x1xf32>
    %cst_15 = arith.constant 3.200000e+01 : f32
    %36 = vector.broadcast %cst_15 : f32 to vector<4x1xf32>
    %37 = arith.divf %35, %36 : vector<4x1xf32>
    %38 = vector.broadcast %30 : vector<4x1xf32> to vector<4x32xf32>
    %39 = arith.subf %26, %38 : vector<4x32xf32>
    %cst_16 = arith.constant 9.99999974E-6 : f32
    %40 = vector.broadcast %cst_16 : f32 to vector<4x1xf32>
    %41 = arith.addf %37, %40 : vector<4x1xf32>
    %42 = math.rsqrt %41 : vector<4x1xf32>
    %43 = vector.broadcast %42 : vector<4x1xf32> to vector<4x32xf32>
    %44 = arith.mulf %39, %43 : vector<4x32xf32>
    %c4 = arith.constant 4 : index
    %c0_17 = arith.constant 0 : index
    %45 = vector.load %arg2[%c4, %c0_17] : memref<40x128xf32, #tpu.memory_space<vmem>>, vector<1x32xf32>
    %46 = vector.broadcast %45 : vector<1x32xf32> to vector<4x32xf32>
    %47 = arith.mulf %44, %46 : vector<4x32xf32>
    %c5 = arith.constant 5 : index
    %c0_18 = arith.constant 0 : index
    %48 = vector.load %arg2[%c5, %c0_18] : memref<40x128xf32, #tpu.memory_space<vmem>>, vector<1x32xf32>
    %49 = vector.broadcast %48 : vector<1x32xf32> to vector<4x32xf32>
    %50 = arith.addf %47, %49 : vector<4x32xf32>
    %c112 = arith.constant 112 : index
    %c0_19 = arith.constant 0 : index
    %51 = vector.load %arg1[%c112, %c0_19] : memref<656x128xf32, #tpu.memory_space<vmem>>, vector<32x64xf32>
    %cst_20 = arith.constant dense<0.000000e+00> : vector<4x64xf32>
    %52 = tpu.matmul %50, %51, %cst_20 {dimension_numbers = #tpu.dot_dimension_numbers<[1], [0], [0], [1], [0, 0, 1, 1], [], []>} : vector<4x32xf32>, vector<32x64xf32>, vector<4x64xf32> -> vector<4x64xf32>
    %c6 = arith.constant 6 : index
    %c0_21 = arith.constant 0 : index
    %53 = vector.load %arg2[%c6, %c0_21] : memref<40x128xf32, #tpu.memory_space<vmem>>, vector<1x64xf32>
    %54 = vector.broadcast %53 : vector<1x64xf32> to vector<4x64xf32>
    %55 = arith.addf %52, %54 : vector<4x64xf32>
    %cst_22 = arith.constant 0.000000e+00 : f32
    %56 = vector.broadcast %cst_22 : f32 to vector<4x64xf32>
    %57 = arith.maximumf %55, %56 : vector<4x64xf32>
    %c144 = arith.constant 144 : index
    %c0_23 = arith.constant 0 : index
    %58 = vector.load %arg1[%c144, %c0_23] : memref<656x128xf32, #tpu.memory_space<vmem>>, vector<64x32xf32>
    %cst_24 = arith.constant dense<0.000000e+00> : vector<4x32xf32>
    %59 = tpu.matmul %57, %58, %cst_24 {dimension_numbers = #tpu.dot_dimension_numbers<[1], [0], [0], [1], [0, 0, 1, 1], [], []>} : vector<4x64xf32>, vector<64x32xf32>, vector<4x32xf32> -> vector<4x32xf32>
    %c7 = arith.constant 7 : index
    %c0_25 = arith.constant 0 : index
    %60 = vector.load %arg2[%c7, %c0_25] : memref<40x128xf32, #tpu.memory_space<vmem>>, vector<1x32xf32>
    %61 = vector.broadcast %60 : vector<1x32xf32> to vector<4x32xf32>
    %62 = arith.addf %59, %61 : vector<4x32xf32>
    %63 = arith.addf %50, %62 : vector<4x32xf32>
    %cst_26 = arith.constant dense<0.000000e+00> : vector<4xf32>
    %64 = vector.multi_reduction <add>, %63, %cst_26 [1] : vector<4x32xf32> to vector<4xf32>
    %65 = vector.shape_cast %64 : vector<4xf32> to vector<4x1xf32>
    %cst_27 = arith.constant 3.200000e+01 : f32
    %66 = vector.broadcast %cst_27 : f32 to vector<4x1xf32>
    %67 = arith.divf %65, %66 : vector<4x1xf32>
    %68 = vector.broadcast %67 : vector<4x1xf32> to vector<4x32xf32>
    %69 = arith.subf %63, %68 : vector<4x32xf32>
    %70 = arith.mulf %69, %69 : vector<4x32xf32>
    %cst_28 = arith.constant dense<0.000000e+00> : vector<4xf32>
    %71 = vector.multi_reduction <add>, %70, %cst_28 [1] : vector<4x32xf32> to vector<4xf32>
    %72 = vector.shape_cast %71 : vector<4xf32> to vector<4x1xf32>
    %cst_29 = arith.constant 3.200000e+01 : f32
    %73 = vector.broadcast %cst_29 : f32 to vector<4x1xf32>
    %74 = arith.divf %72, %73 : vector<4x1xf32>
    %75 = vector.broadcast %67 : vector<4x1xf32> to vector<4x32xf32>
    %76 = arith.subf %63, %75 : vector<4x32xf32>
    %cst_30 = arith.constant 9.99999974E-6 : f32
    %77 = vector.broadcast %cst_30 : f32 to vector<4x1xf32>
    %78 = arith.addf %74, %77 : vector<4x1xf32>
    %79 = math.rsqrt %78 : vector<4x1xf32>
    %80 = vector.broadcast %79 : vector<4x1xf32> to vector<4x32xf32>
    %81 = arith.mulf %76, %80 : vector<4x32xf32>
    %c8 = arith.constant 8 : index
    %c0_31 = arith.constant 0 : index
    %82 = vector.load %arg2[%c8, %c0_31] : memref<40x128xf32, #tpu.memory_space<vmem>>, vector<1x32xf32>
    %83 = vector.broadcast %82 : vector<1x32xf32> to vector<4x32xf32>
    %84 = arith.mulf %81, %83 : vector<4x32xf32>
    %c9 = arith.constant 9 : index
    %c0_32 = arith.constant 0 : index
    %85 = vector.load %arg2[%c9, %c0_32] : memref<40x128xf32, #tpu.memory_space<vmem>>, vector<1x32xf32>
    %86 = vector.broadcast %85 : vector<1x32xf32> to vector<4x32xf32>
    %87 = arith.addf %84, %86 : vector<4x32xf32>
    %c208 = arith.constant 208 : index
    %c0_33 = arith.constant 0 : index
    %88 = vector.load %arg1[%c208, %c0_33] : memref<656x128xf32, #tpu.memory_space<vmem>>, vector<32x32xf32>
    %cst_34 = arith.constant dense<0.000000e+00> : vector<4x32xf32>
    %89 = tpu.matmul %87, %88, %cst_34 {dimension_numbers = #tpu.dot_dimension_numbers<[1], [0], [0], [1], [0, 0, 1, 1], [], []>} : vector<4x32xf32>, vector<32x32xf32>, vector<4x32xf32> -> vector<4x32xf32>
    %c10 = arith.constant 10 : index
    %c0_35 = arith.constant 0 : index
    %90 = vector.load %arg2[%c10, %c0_35] : memref<40x128xf32, #tpu.memory_space<vmem>>, vector<1x32xf32>
    %91 = vector.broadcast %90 : vector<1x32xf32> to vector<4x32xf32>
    %92 = arith.addf %89, %91 : vector<4x32xf32>
    %93 = arith.addf %87, %92 : vector<4x32xf32>
    %cst_36 = arith.constant dense<0.000000e+00> : vector<4xf32>
    %94 = vector.multi_reduction <add>, %93, %cst_36 [1] : vector<4x32xf32> to vector<4xf32>
    %95 = vector.shape_cast %94 : vector<4xf32> to vector<4x1xf32>
    %cst_37 = arith.constant 3.200000e+01 : f32
    %96 = vector.broadcast %cst_37 : f32 to vector<4x1xf32>
    %97 = arith.divf %95, %96 : vector<4x1xf32>
    %98 = vector.broadcast %97 : vector<4x1xf32> to vector<4x32xf32>
    %99 = arith.subf %93, %98 : vector<4x32xf32>
    %100 = arith.mulf %99, %99 : vector<4x32xf32>
    %cst_38 = arith.constant dense<0.000000e+00> : vector<4xf32>
    %101 = vector.multi_reduction <add>, %100, %cst_38 [1] : vector<4x32xf32> to vector<4xf32>
    %102 = vector.shape_cast %101 : vector<4xf32> to vector<4x1xf32>
    %cst_39 = arith.constant 3.200000e+01 : f32
    %103 = vector.broadcast %cst_39 : f32 to vector<4x1xf32>
    %104 = arith.divf %102, %103 : vector<4x1xf32>
    %105 = vector.broadcast %97 : vector<4x1xf32> to vector<4x32xf32>
    %106 = arith.subf %93, %105 : vector<4x32xf32>
    %cst_40 = arith.constant 9.99999974E-6 : f32
    %107 = vector.broadcast %cst_40 : f32 to vector<4x1xf32>
    %108 = arith.addf %104, %107 : vector<4x1xf32>
    %109 = math.rsqrt %108 : vector<4x1xf32>
    %110 = vector.broadcast %109 : vector<4x1xf32> to vector<4x32xf32>
    %111 = arith.mulf %106, %110 : vector<4x32xf32>
    %c11 = arith.constant 11 : index
    %c0_41 = arith.constant 0 : index
    %112 = vector.load %arg2[%c11, %c0_41] : memref<40x128xf32, #tpu.memory_space<vmem>>, vector<1x32xf32>
    %113 = vector.broadcast %112 : vector<1x32xf32> to vector<4x32xf32>
    %114 = arith.mulf %111, %113 : vector<4x32xf32>
    %c12 = arith.constant 12 : index
    %c0_42 = arith.constant 0 : index
    %115 = vector.load %arg2[%c12, %c0_42] : memref<40x128xf32, #tpu.memory_space<vmem>>, vector<1x32xf32>
    %116 = vector.broadcast %115 : vector<1x32xf32> to vector<4x32xf32>
    %117 = arith.addf %114, %116 : vector<4x32xf32>
    %c240 = arith.constant 240 : index
    %c0_43 = arith.constant 0 : index
    %118 = vector.load %arg1[%c240, %c0_43] : memref<656x128xf32, #tpu.memory_space<vmem>>, vector<32x64xf32>
    %cst_44 = arith.constant dense<0.000000e+00> : vector<4x64xf32>
    %119 = tpu.matmul %117, %118, %cst_44 {dimension_numbers = #tpu.dot_dimension_numbers<[1], [0], [0], [1], [0, 0, 1, 1], [], []>} : vector<4x32xf32>, vector<32x64xf32>, vector<4x64xf32> -> vector<4x64xf32>
    %c13 = arith.constant 13 : index
    %c0_45 = arith.constant 0 : index
    %120 = vector.load %arg2[%c13, %c0_45] : memref<40x128xf32, #tpu.memory_space<vmem>>, vector<1x64xf32>
    %121 = vector.broadcast %120 : vector<1x64xf32> to vector<4x64xf32>
    %122 = arith.addf %119, %121 : vector<4x64xf32>
    %cst_46 = arith.constant 0.000000e+00 : f32
    %123 = vector.broadcast %cst_46 : f32 to vector<4x64xf32>
    %124 = arith.maximumf %122, %123 : vector<4x64xf32>
    %c272 = arith.constant 272 : index
    %c0_47 = arith.constant 0 : index
    %125 = vector.load %arg1[%c272, %c0_47] : memref<656x128xf32, #tpu.memory_space<vmem>>, vector<64x32xf32>
    %cst_48 = arith.constant dense<0.000000e+00> : vector<4x32xf32>
    %126 = tpu.matmul %124, %125, %cst_48 {dimension_numbers = #tpu.dot_dimension_numbers<[1], [0], [0], [1], [0, 0, 1, 1], [], []>} : vector<4x64xf32>, vector<64x32xf32>, vector<4x32xf32> -> vector<4x32xf32>
    %c14 = arith.constant 14 : index
    %c0_49 = arith.constant 0 : index
    %127 = vector.load %arg2[%c14, %c0_49] : memref<40x128xf32, #tpu.memory_space<vmem>>, vector<1x32xf32>
    %128 = vector.broadcast %127 : vector<1x32xf32> to vector<4x32xf32>
    %129 = arith.addf %126, %128 : vector<4x32xf32>
    %130 = arith.addf %117, %129 : vector<4x32xf32>
    %cst_50 = arith.constant dense<0.000000e+00> : vector<4xf32>
    %131 = vector.multi_reduction <add>, %130, %cst_50 [1] : vector<4x32xf32> to vector<4xf32>
    %132 = vector.shape_cast %131 : vector<4xf32> to vector<4x1xf32>
    %cst_51 = arith.constant 3.200000e+01 : f32
    %133 = vector.broadcast %cst_51 : f32 to vector<4x1xf32>
    %134 = arith.divf %132, %133 : vector<4x1xf32>
    %135 = vector.broadcast %134 : vector<4x1xf32> to vector<4x32xf32>
    %136 = arith.subf %130, %135 : vector<4x32xf32>
    %137 = arith.mulf %136, %136 : vector<4x32xf32>
    %cst_52 = arith.constant dense<0.000000e+00> : vector<4xf32>
    %138 = vector.multi_reduction <add>, %137, %cst_52 [1] : vector<4x32xf32> to vector<4xf32>
    %139 = vector.shape_cast %138 : vector<4xf32> to vector<4x1xf32>
    %cst_53 = arith.constant 3.200000e+01 : f32
    %140 = vector.broadcast %cst_53 : f32 to vector<4x1xf32>
    %141 = arith.divf %139, %140 : vector<4x1xf32>
    %142 = vector.broadcast %134 : vector<4x1xf32> to vector<4x32xf32>
    %143 = arith.subf %130, %142 : vector<4x32xf32>
    %cst_54 = arith.constant 9.99999974E-6 : f32
    %144 = vector.broadcast %cst_54 : f32 to vector<4x1xf32>
    %145 = arith.addf %141, %144 : vector<4x1xf32>
    %146 = math.rsqrt %145 : vector<4x1xf32>
    %147 = vector.broadcast %146 : vector<4x1xf32> to vector<4x32xf32>
    %148 = arith.mulf %143, %147 : vector<4x32xf32>
    %c15 = arith.constant 15 : index
    %c0_55 = arith.constant 0 : index
    %149 = vector.load %arg2[%c15, %c0_55] : memref<40x128xf32, #tpu.memory_space<vmem>>, vector<1x32xf32>
    %150 = vector.broadcast %149 : vector<1x32xf32> to vector<4x32xf32>
    %151 = arith.mulf %148, %150 : vector<4x32xf32>
    %c16_56 = arith.constant 16 : index
    %c0_57 = arith.constant 0 : index
    %152 = vector.load %arg2[%c16_56, %c0_57] : memref<40x128xf32, #tpu.memory_space<vmem>>, vector<1x32xf32>
    %153 = vector.broadcast %152 : vector<1x32xf32> to vector<4x32xf32>
    %154 = arith.addf %151, %153 : vector<4x32xf32>
    %cst_58 = arith.constant dense<0.000000e+00> : vector<4xf32>
    %155 = vector.multi_reduction <add>, %154, %cst_58 [1] : vector<4x32xf32> to vector<4xf32>
    %156 = vector.shape_cast %155 : vector<4xf32> to vector<4x1xf32>
    %cst_59 = arith.constant 3.200000e+01 : f32
    %157 = vector.broadcast %cst_59 : f32 to vector<4x1xf32>
    %158 = arith.divf %156, %157 : vector<4x1xf32>
    %159 = vector.broadcast %158 : vector<4x1xf32> to vector<4x32xf32>
    %160 = arith.subf %154, %159 : vector<4x32xf32>
    %161 = arith.mulf %160, %160 : vector<4x32xf32>
    %cst_60 = arith.constant dense<0.000000e+00> : vector<4xf32>
    %162 = vector.multi_reduction <add>, %161, %cst_60 [1] : vector<4x32xf32> to vector<4xf32>
    %163 = vector.shape_cast %162 : vector<4xf32> to vector<4x1xf32>
    %cst_61 = arith.constant 3.200000e+01 : f32
    %164 = vector.broadcast %cst_61 : f32 to vector<4x1xf32>
    %165 = arith.divf %163, %164 : vector<4x1xf32>
    %166 = vector.broadcast %158 : vector<4x1xf32> to vector<4x32xf32>
    %167 = arith.subf %154, %166 : vector<4x32xf32>
    %cst_62 = arith.constant 9.99999974E-6 : f32
    %168 = vector.broadcast %cst_62 : f32 to vector<4x1xf32>
    %169 = arith.addf %165, %168 : vector<4x1xf32>
    %170 = math.rsqrt %169 : vector<4x1xf32>
    %171 = vector.broadcast %170 : vector<4x1xf32> to vector<4x32xf32>
    %172 = arith.mulf %167, %171 : vector<4x32xf32>
    %c336 = arith.constant 336 : index
    %c0_63 = arith.constant 0 : index
    %173 = vector.load %arg1[%c336, %c0_63] : memref<656x128xf32, #tpu.memory_space<vmem>>, vector<32x64xf32>
    %cst_64 = arith.constant dense<0.000000e+00> : vector<4x64xf32>
    %174 = tpu.matmul %172, %173, %cst_64 {dimension_numbers = #tpu.dot_dimension_numbers<[1], [0], [0], [1], [0, 0, 1, 1], [], []>} : vector<4x32xf32>, vector<32x64xf32>, vector<4x64xf32> -> vector<4x64xf32>
    %c17 = arith.constant 17 : index
    %c0_65 = arith.constant 0 : index
    %175 = vector.load %arg2[%c17, %c0_65] : memref<40x128xf32, #tpu.memory_space<vmem>>, vector<1x64xf32>
    %176 = vector.broadcast %175 : vector<1x64xf32> to vector<4x64xf32>
    %177 = arith.addf %174, %176 : vector<4x64xf32>
    %c1 = arith.constant 1 : index
    %c0_66 = arith.constant 0 : index
    %178 = vector.load %arg2[%c1, %c0_66] : memref<40x128xf32, #tpu.memory_space<vmem>>, vector<1x32xf32>
    %c368 = arith.constant 368 : index
    %c0_67 = arith.constant 0 : index
    %179 = vector.load %arg1[%c368, %c0_67] : memref<656x128xf32, #tpu.memory_space<vmem>>, vector<32x32xf32>
    %cst_68 = arith.constant dense<0.000000e+00> : vector<1x32xf32>
    %180 = tpu.matmul %178, %179, %cst_68 {dimension_numbers = #tpu.dot_dimension_numbers<[1], [0], [0], [1], [0, 0, 1, 1], [], []>} : vector<1x32xf32>, vector<32x32xf32>, vector<1x32xf32> -> vector<1x32xf32>
    %c18 = arith.constant 18 : index
    %c0_69 = arith.constant 0 : index
    %181 = vector.load %arg2[%c18, %c0_69] : memref<40x128xf32, #tpu.memory_space<vmem>>, vector<1x32xf32>
    %182 = arith.addf %180, %181 : vector<1x32xf32>
    %183 = arith.addf %178, %182 : vector<1x32xf32>
    %cst_70 = arith.constant dense<0.000000e+00> : vector<1xf32>
    %184 = vector.multi_reduction <add>, %183, %cst_70 [1] : vector<1x32xf32> to vector<1xf32>
    %185 = vector.shape_cast %184 : vector<1xf32> to vector<1x1xf32>
    %cst_71 = arith.constant 3.200000e+01 : f32
    %186 = vector.broadcast %cst_71 : f32 to vector<1x1xf32>
    %187 = arith.divf %185, %186 : vector<1x1xf32>
    %188 = vector.broadcast %187 : vector<1x1xf32> to vector<1x32xf32>
    %189 = arith.subf %183, %188 : vector<1x32xf32>
    %190 = arith.mulf %189, %189 : vector<1x32xf32>
    %cst_72 = arith.constant dense<0.000000e+00> : vector<1xf32>
    %191 = vector.multi_reduction <add>, %190, %cst_72 [1] : vector<1x32xf32> to vector<1xf32>
    %192 = vector.shape_cast %191 : vector<1xf32> to vector<1x1xf32>
    %cst_73 = arith.constant 3.200000e+01 : f32
    %193 = vector.broadcast %cst_73 : f32 to vector<1x1xf32>
    %194 = arith.divf %192, %193 : vector<1x1xf32>
    %195 = vector.broadcast %187 : vector<1x1xf32> to vector<1x32xf32>
    %196 = arith.subf %183, %195 : vector<1x32xf32>
    %cst_74 = arith.constant 9.99999974E-6 : f32
    %197 = vector.broadcast %cst_74 : f32 to vector<1x1xf32>
    %198 = arith.addf %194, %197 : vector<1x1xf32>
    %199 = math.rsqrt %198 : vector<1x1xf32>
    %200 = vector.broadcast %199 : vector<1x1xf32> to vector<1x32xf32>
    %201 = arith.mulf %196, %200 : vector<1x32xf32>
    %c19 = arith.constant 19 : index
    %c0_75 = arith.constant 0 : index
    %202 = vector.load %arg2[%c19, %c0_75] : memref<40x128xf32, #tpu.memory_space<vmem>>, vector<1x32xf32>
    %203 = arith.mulf %201, %202 : vector<1x32xf32>
    %c20 = arith.constant 20 : index
    %c0_76 = arith.constant 0 : index
    %204 = vector.load %arg2[%c20, %c0_76] : memref<40x128xf32, #tpu.memory_space<vmem>>, vector<1x32xf32>
    %205 = arith.addf %203, %204 : vector<1x32xf32>
    %206 = vector.shape_cast %205 : vector<1x32xf32> to vector<1x32xf32>
    %207 = vector.broadcast %206 : vector<1x32xf32> to vector<4x32xf32>
    %208 = vector.extract_strided_slice %177 {offsets = [0, 0], sizes = [4, 32], strides = [1, 1]} : vector<4x64xf32> to vector<4x32xf32>
    %209 = arith.addf %207, %208 : vector<4x32xf32>
    %cst_77 = arith.constant dense<0.000000e+00> : vector<4xf32>
    %210 = vector.multi_reduction <add>, %209, %cst_77 [1] : vector<4x32xf32> to vector<4xf32>
    %211 = vector.shape_cast %210 : vector<4xf32> to vector<4x1xf32>
    %cst_78 = arith.constant 3.200000e+01 : f32
    %212 = vector.broadcast %cst_78 : f32 to vector<4x1xf32>
    %213 = arith.divf %211, %212 : vector<4x1xf32>
    %214 = vector.broadcast %213 : vector<4x1xf32> to vector<4x32xf32>
    %215 = arith.subf %209, %214 : vector<4x32xf32>
    %216 = arith.mulf %215, %215 : vector<4x32xf32>
    %cst_79 = arith.constant dense<0.000000e+00> : vector<4xf32>
    %217 = vector.multi_reduction <add>, %216, %cst_79 [1] : vector<4x32xf32> to vector<4xf32>
    %218 = vector.shape_cast %217 : vector<4xf32> to vector<4x1xf32>
    %cst_80 = arith.constant 3.200000e+01 : f32
    %219 = vector.broadcast %cst_80 : f32 to vector<4x1xf32>
    %220 = arith.divf %218, %219 : vector<4x1xf32>
    %221 = vector.broadcast %213 : vector<4x1xf32> to vector<4x32xf32>
    %222 = arith.subf %209, %221 : vector<4x32xf32>
    %cst_81 = arith.constant 9.99999974E-6 : f32
    %223 = vector.broadcast %cst_81 : f32 to vector<4x1xf32>
    %224 = arith.addf %220, %223 : vector<4x1xf32>
    %225 = math.rsqrt %224 : vector<4x1xf32>
    %226 = vector.broadcast %225 : vector<4x1xf32> to vector<4x32xf32>
    %227 = arith.mulf %222, %226 : vector<4x32xf32>
    %c21 = arith.constant 21 : index
    %c0_82 = arith.constant 0 : index
    %228 = vector.load %arg2[%c21, %c0_82] : memref<40x128xf32, #tpu.memory_space<vmem>>, vector<1x32xf32>
    %229 = vector.broadcast %228 : vector<1x32xf32> to vector<4x32xf32>
    %230 = arith.mulf %227, %229 : vector<4x32xf32>
    %c22 = arith.constant 22 : index
    %c0_83 = arith.constant 0 : index
    %231 = vector.load %arg2[%c22, %c0_83] : memref<40x128xf32, #tpu.memory_space<vmem>>, vector<1x32xf32>
    %232 = vector.broadcast %231 : vector<1x32xf32> to vector<4x32xf32>
    %233 = arith.addf %230, %232 : vector<4x32xf32>
    %c400 = arith.constant 400 : index
    %c0_84 = arith.constant 0 : index
    %234 = vector.load %arg1[%c400, %c0_84] : memref<656x128xf32, #tpu.memory_space<vmem>>, vector<32x64xf32>
    %cst_85 = arith.constant dense<0.000000e+00> : vector<4x64xf32>
    %235 = tpu.matmul %233, %234, %cst_85 {dimension_numbers = #tpu.dot_dimension_numbers<[1], [0], [0], [1], [0, 0, 1, 1], [], []>} : vector<4x32xf32>, vector<32x64xf32>, vector<4x64xf32> -> vector<4x64xf32>
    %c23 = arith.constant 23 : index
    %c0_86 = arith.constant 0 : index
    %236 = vector.load %arg2[%c23, %c0_86] : memref<40x128xf32, #tpu.memory_space<vmem>>, vector<1x64xf32>
    %237 = vector.broadcast %236 : vector<1x64xf32> to vector<4x64xf32>
    %238 = arith.addf %235, %237 : vector<4x64xf32>
    %cst_87 = arith.constant 0.000000e+00 : f32
    %239 = vector.broadcast %cst_87 : f32 to vector<4x64xf32>
    %240 = arith.maximumf %238, %239 : vector<4x64xf32>
    %c432 = arith.constant 432 : index
    %c0_88 = arith.constant 0 : index
    %241 = vector.load %arg1[%c432, %c0_88] : memref<656x128xf32, #tpu.memory_space<vmem>>, vector<64x32xf32>
    %cst_89 = arith.constant dense<0.000000e+00> : vector<4x32xf32>
    %242 = tpu.matmul %240, %241, %cst_89 {dimension_numbers = #tpu.dot_dimension_numbers<[1], [0], [0], [1], [0, 0, 1, 1], [], []>} : vector<4x64xf32>, vector<64x32xf32>, vector<4x32xf32> -> vector<4x32xf32>
    %c24 = arith.constant 24 : index
    %c0_90 = arith.constant 0 : index
    %243 = vector.load %arg2[%c24, %c0_90] : memref<40x128xf32, #tpu.memory_space<vmem>>, vector<1x32xf32>
    %244 = vector.broadcast %243 : vector<1x32xf32> to vector<4x32xf32>
    %245 = arith.addf %242, %244 : vector<4x32xf32>
    %246 = arith.addf %233, %245 : vector<4x32xf32>
    %cst_91 = arith.constant dense<0.000000e+00> : vector<4xf32>
    %247 = vector.multi_reduction <add>, %246, %cst_91 [1] : vector<4x32xf32> to vector<4xf32>
    %248 = vector.shape_cast %247 : vector<4xf32> to vector<4x1xf32>
    %cst_92 = arith.constant 3.200000e+01 : f32
    %249 = vector.broadcast %cst_92 : f32 to vector<4x1xf32>
    %250 = arith.divf %248, %249 : vector<4x1xf32>
    %251 = vector.broadcast %250 : vector<4x1xf32> to vector<4x32xf32>
    %252 = arith.subf %246, %251 : vector<4x32xf32>
    %253 = arith.mulf %252, %252 : vector<4x32xf32>
    %cst_93 = arith.constant dense<0.000000e+00> : vector<4xf32>
    %254 = vector.multi_reduction <add>, %253, %cst_93 [1] : vector<4x32xf32> to vector<4xf32>
    %255 = vector.shape_cast %254 : vector<4xf32> to vector<4x1xf32>
    %cst_94 = arith.constant 3.200000e+01 : f32
    %256 = vector.broadcast %cst_94 : f32 to vector<4x1xf32>
    %257 = arith.divf %255, %256 : vector<4x1xf32>
    %258 = vector.broadcast %250 : vector<4x1xf32> to vector<4x32xf32>
    %259 = arith.subf %246, %258 : vector<4x32xf32>
    %cst_95 = arith.constant 9.99999974E-6 : f32
    %260 = vector.broadcast %cst_95 : f32 to vector<4x1xf32>
    %261 = arith.addf %257, %260 : vector<4x1xf32>
    %262 = math.rsqrt %261 : vector<4x1xf32>
    %263 = vector.broadcast %262 : vector<4x1xf32> to vector<4x32xf32>
    %264 = arith.mulf %259, %263 : vector<4x32xf32>
    %c25 = arith.constant 25 : index
    %c0_96 = arith.constant 0 : index
    %265 = vector.load %arg2[%c25, %c0_96] : memref<40x128xf32, #tpu.memory_space<vmem>>, vector<1x32xf32>
    %266 = vector.broadcast %265 : vector<1x32xf32> to vector<4x32xf32>
    %267 = arith.mulf %264, %266 : vector<4x32xf32>
    %c26 = arith.constant 26 : index
    %c0_97 = arith.constant 0 : index
    %268 = vector.load %arg2[%c26, %c0_97] : memref<40x128xf32, #tpu.memory_space<vmem>>, vector<1x32xf32>
    %269 = vector.broadcast %268 : vector<1x32xf32> to vector<4x32xf32>
    %270 = arith.addf %267, %269 : vector<4x32xf32>
    %c496 = arith.constant 496 : index
    %c0_98 = arith.constant 0 : index
    %271 = vector.load %arg1[%c496, %c0_98] : memref<656x128xf32, #tpu.memory_space<vmem>>, vector<32x32xf32>
    %cst_99 = arith.constant dense<0.000000e+00> : vector<4x32xf32>
    %272 = tpu.matmul %270, %271, %cst_99 {dimension_numbers = #tpu.dot_dimension_numbers<[1], [0], [0], [1], [0, 0, 1, 1], [], []>} : vector<4x32xf32>, vector<32x32xf32>, vector<4x32xf32> -> vector<4x32xf32>
    %c27 = arith.constant 27 : index
    %c0_100 = arith.constant 0 : index
    %273 = vector.load %arg2[%c27, %c0_100] : memref<40x128xf32, #tpu.memory_space<vmem>>, vector<1x32xf32>
    %274 = vector.broadcast %273 : vector<1x32xf32> to vector<4x32xf32>
    %275 = arith.addf %272, %274 : vector<4x32xf32>
    %276 = arith.addf %270, %275 : vector<4x32xf32>
    %cst_101 = arith.constant dense<0.000000e+00> : vector<4xf32>
    %277 = vector.multi_reduction <add>, %276, %cst_101 [1] : vector<4x32xf32> to vector<4xf32>
    %278 = vector.shape_cast %277 : vector<4xf32> to vector<4x1xf32>
    %cst_102 = arith.constant 3.200000e+01 : f32
    %279 = vector.broadcast %cst_102 : f32 to vector<4x1xf32>
    %280 = arith.divf %278, %279 : vector<4x1xf32>
    %281 = vector.broadcast %280 : vector<4x1xf32> to vector<4x32xf32>
    %282 = arith.subf %276, %281 : vector<4x32xf32>
    %283 = arith.mulf %282, %282 : vector<4x32xf32>
    %cst_103 = arith.constant dense<0.000000e+00> : vector<4xf32>
    %284 = vector.multi_reduction <add>, %283, %cst_103 [1] : vector<4x32xf32> to vector<4xf32>
    %285 = vector.shape_cast %284 : vector<4xf32> to vector<4x1xf32>
    %cst_104 = arith.constant 3.200000e+01 : f32
    %286 = vector.broadcast %cst_104 : f32 to vector<4x1xf32>
    %287 = arith.divf %285, %286 : vector<4x1xf32>
    %288 = vector.broadcast %280 : vector<4x1xf32> to vector<4x32xf32>
    %289 = arith.subf %276, %288 : vector<4x32xf32>
    %cst_105 = arith.constant 9.99999974E-6 : f32
    %290 = vector.broadcast %cst_105 : f32 to vector<4x1xf32>
    %291 = arith.addf %287, %290 : vector<4x1xf32>
    %292 = math.rsqrt %291 : vector<4x1xf32>
    %293 = vector.broadcast %292 : vector<4x1xf32> to vector<4x32xf32>
    %294 = arith.mulf %289, %293 : vector<4x32xf32>
    %c28 = arith.constant 28 : index
    %c0_106 = arith.constant 0 : index
    %295 = vector.load %arg2[%c28, %c0_106] : memref<40x128xf32, #tpu.memory_space<vmem>>, vector<1x32xf32>
    %296 = vector.broadcast %295 : vector<1x32xf32> to vector<4x32xf32>
    %297 = arith.mulf %294, %296 : vector<4x32xf32>
    %c29 = arith.constant 29 : index
    %c0_107 = arith.constant 0 : index
    %298 = vector.load %arg2[%c29, %c0_107] : memref<40x128xf32, #tpu.memory_space<vmem>>, vector<1x32xf32>
    %299 = vector.broadcast %298 : vector<1x32xf32> to vector<4x32xf32>
    %300 = arith.addf %297, %299 : vector<4x32xf32>
    %301 = vector.extract_strided_slice %177 {offsets = [0, 32], sizes = [4, 32], strides = [1, 1]} : vector<4x64xf32> to vector<4x32xf32>
    %302 = arith.addf %300, %301 : vector<4x32xf32>
    %cst_108 = arith.constant dense<0.000000e+00> : vector<4xf32>
    %303 = vector.multi_reduction <add>, %302, %cst_108 [1] : vector<4x32xf32> to vector<4xf32>
    %304 = vector.shape_cast %303 : vector<4xf32> to vector<4x1xf32>
    %cst_109 = arith.constant 3.200000e+01 : f32
    %305 = vector.broadcast %cst_109 : f32 to vector<4x1xf32>
    %306 = arith.divf %304, %305 : vector<4x1xf32>
    %307 = vector.broadcast %306 : vector<4x1xf32> to vector<4x32xf32>
    %308 = arith.subf %302, %307 : vector<4x32xf32>
    %309 = arith.mulf %308, %308 : vector<4x32xf32>
    %cst_110 = arith.constant dense<0.000000e+00> : vector<4xf32>
    %310 = vector.multi_reduction <add>, %309, %cst_110 [1] : vector<4x32xf32> to vector<4xf32>
    %311 = vector.shape_cast %310 : vector<4xf32> to vector<4x1xf32>
    %cst_111 = arith.constant 3.200000e+01 : f32
    %312 = vector.broadcast %cst_111 : f32 to vector<4x1xf32>
    %313 = arith.divf %311, %312 : vector<4x1xf32>
    %314 = vector.broadcast %306 : vector<4x1xf32> to vector<4x32xf32>
    %315 = arith.subf %302, %314 : vector<4x32xf32>
    %cst_112 = arith.constant 9.99999974E-6 : f32
    %316 = vector.broadcast %cst_112 : f32 to vector<4x1xf32>
    %317 = arith.addf %313, %316 : vector<4x1xf32>
    %318 = math.rsqrt %317 : vector<4x1xf32>
    %319 = vector.broadcast %318 : vector<4x1xf32> to vector<4x32xf32>
    %320 = arith.mulf %315, %319 : vector<4x32xf32>
    %c30 = arith.constant 30 : index
    %c0_113 = arith.constant 0 : index
    %321 = vector.load %arg2[%c30, %c0_113] : memref<40x128xf32, #tpu.memory_space<vmem>>, vector<1x32xf32>
    %322 = vector.broadcast %321 : vector<1x32xf32> to vector<4x32xf32>
    %323 = arith.mulf %320, %322 : vector<4x32xf32>
    %c31 = arith.constant 31 : index
    %c0_114 = arith.constant 0 : index
    %324 = vector.load %arg2[%c31, %c0_114] : memref<40x128xf32, #tpu.memory_space<vmem>>, vector<1x32xf32>
    %325 = vector.broadcast %324 : vector<1x32xf32> to vector<4x32xf32>
    %326 = arith.addf %323, %325 : vector<4x32xf32>
    %c528 = arith.constant 528 : index
    %c0_115 = arith.constant 0 : index
    %327 = vector.load %arg1[%c528, %c0_115] : memref<656x128xf32, #tpu.memory_space<vmem>>, vector<32x64xf32>
    %cst_116 = arith.constant dense<0.000000e+00> : vector<4x64xf32>
    %328 = tpu.matmul %326, %327, %cst_116 {dimension_numbers = #tpu.dot_dimension_numbers<[1], [0], [0], [1], [0, 0, 1, 1], [], []>} : vector<4x32xf32>, vector<32x64xf32>, vector<4x64xf32> -> vector<4x64xf32>
    %c32 = arith.constant 32 : index
    %c0_117 = arith.constant 0 : index
    %329 = vector.load %arg2[%c32, %c0_117] : memref<40x128xf32, #tpu.memory_space<vmem>>, vector<1x64xf32>
    %330 = vector.broadcast %329 : vector<1x64xf32> to vector<4x64xf32>
    %331 = arith.addf %328, %330 : vector<4x64xf32>
    %cst_118 = arith.constant 0.000000e+00 : f32
    %332 = vector.broadcast %cst_118 : f32 to vector<4x64xf32>
    %333 = arith.maximumf %331, %332 : vector<4x64xf32>
    %c560 = arith.constant 560 : index
    %c0_119 = arith.constant 0 : index
    %334 = vector.load %arg1[%c560, %c0_119] : memref<656x128xf32, #tpu.memory_space<vmem>>, vector<64x32xf32>
    %cst_120 = arith.constant dense<0.000000e+00> : vector<4x32xf32>
    %335 = tpu.matmul %333, %334, %cst_120 {dimension_numbers = #tpu.dot_dimension_numbers<[1], [0], [0], [1], [0, 0, 1, 1], [], []>} : vector<4x64xf32>, vector<64x32xf32>, vector<4x32xf32> -> vector<4x32xf32>
    %c33 = arith.constant 33 : index
    %c0_121 = arith.constant 0 : index
    %336 = vector.load %arg2[%c33, %c0_121] : memref<40x128xf32, #tpu.memory_space<vmem>>, vector<1x32xf32>
    %337 = vector.broadcast %336 : vector<1x32xf32> to vector<4x32xf32>
    %338 = arith.addf %335, %337 : vector<4x32xf32>
    %339 = arith.addf %326, %338 : vector<4x32xf32>
    %cst_122 = arith.constant dense<0.000000e+00> : vector<4xf32>
    %340 = vector.multi_reduction <add>, %339, %cst_122 [1] : vector<4x32xf32> to vector<4xf32>
    %341 = vector.shape_cast %340 : vector<4xf32> to vector<4x1xf32>
    %cst_123 = arith.constant 3.200000e+01 : f32
    %342 = vector.broadcast %cst_123 : f32 to vector<4x1xf32>
    %343 = arith.divf %341, %342 : vector<4x1xf32>
    %344 = vector.broadcast %343 : vector<4x1xf32> to vector<4x32xf32>
    %345 = arith.subf %339, %344 : vector<4x32xf32>
    %346 = arith.mulf %345, %345 : vector<4x32xf32>
    %cst_124 = arith.constant dense<0.000000e+00> : vector<4xf32>
    %347 = vector.multi_reduction <add>, %346, %cst_124 [1] : vector<4x32xf32> to vector<4xf32>
    %348 = vector.shape_cast %347 : vector<4xf32> to vector<4x1xf32>
    %cst_125 = arith.constant 3.200000e+01 : f32
    %349 = vector.broadcast %cst_125 : f32 to vector<4x1xf32>
    %350 = arith.divf %348, %349 : vector<4x1xf32>
    %351 = vector.broadcast %343 : vector<4x1xf32> to vector<4x32xf32>
    %352 = arith.subf %339, %351 : vector<4x32xf32>
    %cst_126 = arith.constant 9.99999974E-6 : f32
    %353 = vector.broadcast %cst_126 : f32 to vector<4x1xf32>
    %354 = arith.addf %350, %353 : vector<4x1xf32>
    %355 = math.rsqrt %354 : vector<4x1xf32>
    %356 = vector.broadcast %355 : vector<4x1xf32> to vector<4x32xf32>
    %357 = arith.mulf %352, %356 : vector<4x32xf32>
    %c34 = arith.constant 34 : index
    %c0_127 = arith.constant 0 : index
    %358 = vector.load %arg2[%c34, %c0_127] : memref<40x128xf32, #tpu.memory_space<vmem>>, vector<1x32xf32>
    %359 = vector.broadcast %358 : vector<1x32xf32> to vector<4x32xf32>
    %360 = arith.mulf %357, %359 : vector<4x32xf32>
    %c35 = arith.constant 35 : index
    %c0_128 = arith.constant 0 : index
    %361 = vector.load %arg2[%c35, %c0_128] : memref<40x128xf32, #tpu.memory_space<vmem>>, vector<1x32xf32>
    %362 = vector.broadcast %361 : vector<1x32xf32> to vector<4x32xf32>
    %363 = arith.addf %360, %362 : vector<4x32xf32>
    %cst_129 = arith.constant dense<0.000000e+00> : vector<4xf32>
    %364 = vector.multi_reduction <add>, %363, %cst_129 [1] : vector<4x32xf32> to vector<4xf32>
    %365 = vector.shape_cast %364 : vector<4xf32> to vector<4x1xf32>
    %cst_130 = arith.constant 3.200000e+01 : f32
    %366 = vector.broadcast %cst_130 : f32 to vector<4x1xf32>
    %367 = arith.divf %365, %366 : vector<4x1xf32>
    %368 = vector.broadcast %367 : vector<4x1xf32> to vector<4x32xf32>
    %369 = arith.subf %363, %368 : vector<4x32xf32>
    %370 = arith.mulf %369, %369 : vector<4x32xf32>
    %cst_131 = arith.constant dense<0.000000e+00> : vector<4xf32>
    %371 = vector.multi_reduction <add>, %370, %cst_131 [1] : vector<4x32xf32> to vector<4xf32>
    %372 = vector.shape_cast %371 : vector<4xf32> to vector<4x1xf32>
    %cst_132 = arith.constant 3.200000e+01 : f32
    %373 = vector.broadcast %cst_132 : f32 to vector<4x1xf32>
    %374 = arith.divf %372, %373 : vector<4x1xf32>
    %375 = vector.broadcast %367 : vector<4x1xf32> to vector<4x32xf32>
    %376 = arith.subf %363, %375 : vector<4x32xf32>
    %cst_133 = arith.constant 9.99999974E-6 : f32
    %377 = vector.broadcast %cst_133 : f32 to vector<4x1xf32>
    %378 = arith.addf %374, %377 : vector<4x1xf32>
    %379 = math.rsqrt %378 : vector<4x1xf32>
    %380 = vector.broadcast %379 : vector<4x1xf32> to vector<4x32xf32>
    %381 = arith.mulf %376, %380 : vector<4x32xf32>
    %c624 = arith.constant 624 : index
    %c0_134 = arith.constant 0 : index
    %382 = vector.load %arg1[%c624, %c0_134] : memref<656x128xf32, #tpu.memory_space<vmem>>, vector<32x4xf32>
    %cst_135 = arith.constant dense<0.000000e+00> : vector<4x4xf32>
    %383 = tpu.matmul %381, %382, %cst_135 {dimension_numbers = #tpu.dot_dimension_numbers<[1], [0], [0], [1], [0, 0, 1, 1], [], []>} : vector<4x32xf32>, vector<32x4xf32>, vector<4x4xf32> -> vector<4x4xf32>
    %c36 = arith.constant 36 : index
    %c0_136 = arith.constant 0 : index
    %384 = vector.load %arg2[%c36, %c0_136] : memref<40x128xf32, #tpu.memory_space<vmem>>, vector<1x4xf32>
    %385 = vector.broadcast %384 : vector<1x4xf32> to vector<4x4xf32>
    %386 = arith.addf %383, %385 : vector<4x4xf32>
    %c0_137 = arith.constant 0 : index
    %c0_138 = arith.constant 0 : index
    %387 = vector.load %arg3[%c0_137, %c0_138] : memref<4x4xf32, #tpu.memory_space<vmem>>, vector<4x4xf32>
    tpu.vector_store %arg3[%c0_137, %c0_138], %386 {strides = array<i32>} : memref<4x4xf32, #tpu.memory_space<vmem>>, vector<4x4xf32>,
    return
  }
}

</mosaic_0001>

<llo_original>
// kernel: tpu_custom_call.1
$region0: #{tpu_custom_call.1}
  #allocation0 [shape = 'u32[]', space=smem, size = 0x4, offset = 0x4, fixed_abs, tag = 'smem constant byte address 0x4 - core index']
  #allocation1 [shape = 'u32[72,128]{1,0:T(1,128)}', space=vmem, size = 0x9000, scoped, tag = 'internal scratch']
  %s0 = inlined_call_operand.hbm [shape: f32[4,16], index: 0, kind: input, shape index: {}]
  %s1 = inlined_call_operand.hbm [shape: f32[656,128], index: 1, kind: input, shape index: {}]
  %s2 = inlined_call_operand.hbm [shape: f32[40,128], index: 2, kind: input, shape index: {}]
  %s3 = inlined_call_operand.hbm [shape: f32[4,4], index: 3, kind: output, shape index: {}]
  %s4 = sld [smem:[#allocation0]]
  $region34: #{tpu_custom_call.1} parent=0
    _
  %s6 = ssub.s32 1, %s4
  %s7 = scalar_select 0, %s6, %s4
  $region1: #{tpu_custom_call.1} parent=0
    #allocation2 [shape = 'u8[2048]{0}', space=vmem, size = 0x800, scoped, tag = 'input window, operand 0, single buffered']
    #allocation3 [shape = 's32[1]{0}', space=sflag, size = 0x4, scoped, tag = 'scoped memory for tpu_custom_call.1']
    #allocation4 [shape = 's32[1]{0}', space=sflag, size = 0x4, scoped, tag = 'scoped memory for tpu_custom_call.1']
    #allocation5 [shape = 'u8[335872]{0}', space=vmem, size = 0x52000, scoped, tag = 'input window, operand 1, single buffered']
    #allocation6 [shape = 's32[1]{0}', space=sflag, size = 0x4, scoped, tag = 'scoped memory for tpu_custom_call.1']
    #allocation7 [shape = 'u8[20480]{0}', space=vmem, size = 0x5000, scoped, tag = 'input window, operand 2, single buffered']
    #allocation8 [shape = 'u8[2048]{0}', space=vmem, size = 0x800, scoped, tag = 'output window, operand 0, single buffered']
    %8 = vsyncpa [#allocation3], 0
    %9 = vsyncpa [#allocation6], 0
    %10 = vsyncpa [#allocation4], 0
    // Predicated region
    $region2: #{tpu_custom_call.1} parent=1 // pred_check
      _
    $region3: #{tpu_custom_call.1} parent=1 // pred_check_branch
      %12 = sbr.rel (0) target = $region5
    $region4: #{tpu_custom_call.1} parent=1 // pred_region
      %14 = vsyncadd [#allocation3], 0
      %s16 = sshll.u32 %s0, 4
      %s17 = int_to_ptr.hbm [resolvable:$true] %s16
      %s18 = sshll.u32 [#allocation2], 4
      %s19 = int_to_ptr.vmem [resolvable:$true] %s18
      %21 = dma.hbm_to_vmem [thread:$0]  %s17, 64, %s19, [#allocation3]
    $region5: #{tpu_custom_call.1} parent=1 // pred_fallthru
      _
    // Predicated region
    $region6: #{tpu_custom_call.1} parent=1 // pred_check
      _
    $region7: #{tpu_custom_call.1} parent=1 // pred_check_branch
      %23 = sbr.rel (0) target = $region9
    $region8: #{tpu_custom_call.1} parent=1 // pred_region
      %25 = vsyncadd [#allocation6], 0
      %s26 = sshll.u32 %s1, 4
      %s27 = int_to_ptr.hbm [resolvable:$true] %s26
      %s28 = sshll.u32 [#allocation5], 4
      %s29 = int_to_ptr.vmem [resolvable:$true] %s28
      %34 = dma.hbm_to_vmem [thread:$0]  %s27, 10496, %s29, [#allocation6], 128, 128, 8
    $region9: #{tpu_custom_call.1} parent=1 // pred_fallthru
      _
    // Predicated region
    $region10: #{tpu_custom_call.1} parent=1 // pred_check
      _
    $region11: #{tpu_custom_call.1} parent=1 // pred_check_branch
      %36 = sbr.rel (0) target = $region13
    $region12: #{tpu_custom_call.1} parent=1 // pred_region
      %38 = vsyncadd [#allocation6], 0
      %s39 = sshll.u32 %s2, 4
      %s40 = int_to_ptr.hbm [resolvable:$true] %s39
      %s41 = sshll.u32 [#allocation7], 4
      %s42 = int_to_ptr.vmem [resolvable:$true] %s41
      %47 = dma.hbm_to_vmem [thread:$0]  %s40, 640, %s42, [#allocation6], 128, 128, 8
    $region13: #{tpu_custom_call.1} parent=1 // pred_fallthru
      _
    // Predicated region
    $region14: #{tpu_custom_call.1} parent=1 // pred_check
      _
    $region15: #{tpu_custom_call.1} parent=1 // pred_check_branch
      %49 = sbr.rel (0) target = $region17
    $region16: #{tpu_custom_call.1} parent=1 // pred_region
      %51 = dma.done [#allocation3], 64
    $region17: #{tpu_custom_call.1} parent=1 // pred_fallthru
      _
    // Predicated region
    $region18: #{tpu_custom_call.1} parent=1 // pred_check
      _
    $region19: #{tpu_custom_call.1} parent=1 // pred_check_branch
      %53 = sbr.rel (0) target = $region21
    $region20: #{tpu_custom_call.1} parent=1 // pred_region
      %55 = dma.done [#allocation6], 10496
    $region21: #{tpu_custom_call.1} parent=1 // pred_fallthru
      _
    // Predicated region
    $region22: #{tpu_custom_call.1} parent=1 // pred_check
      _
    $region23: #{tpu_custom_call.1} parent=1 // pred_check_branch
      %57 = sbr.rel (0) target = $region25
    $region24: #{tpu_custom_call.1} parent=1 // pred_region
      %59 = dma.done [#allocation6], 640
    $region25: #{tpu_custom_call.1} parent=1 // pred_fallthru
      _
    %v60 = vld [vmem:[#allocation2] sm:$0xf]
    %v61 = vld [vmem:[#allocation5] sm:$0xff]
    %v62 = vld [vmem:[#allocation5 + $0x8] sm:$0xff]
    %v63 = vld [vmem:[#allocation7] sm:$0x1]
    %v64 = vperm.slane %v63, 0
    %vm65 = vcmask 130048
    %v67 = vsel %vm65, %v60, 0
    %69 = vmatpush.msra.mxu0 0.0
    %70 = vmatpush.msra.mxu0 0.0
    %71 = vmatpush.msra.mxu0 0.0
    %72 = vmatpush.msra.mxu0 0.0
    %73 = vmatpush.msra.mxu0 0.0
    %74 = vmatpush.msra.mxu0 0.0
    %75 = vmatpush.msra.mxu0 0.0
    %76 = vmatpush.msra.mxu0 0.0
    %77 = vmatpush.msra.mxu0 0.0
    %78 = vmatpush.msra.mxu0 0.0
    %79 = vmatpush.msra.mxu0 0.0
    %80 = vmatpush.msra.mxu0 0.0
    %81 = vmatpush.msra.mxu0 0.0
    %82 = vmatpush.msra.mxu0 0.0
    %83 = vmatpush.msra.mxu0 %v62
    %84 = vmatpush.msra.mxu0 %v61
    %85 = vmatmul.f32.gmra.mxu0 %v67
    %v86 = vpop.f32.mrf.mxu0
    %v87 = vadd.f32 %v64, %v86
    %88 = vdwg.mxu0
    %v89 = vld [vmem:[#allocation5 + $0x10] sm:$0xff]
    %v90 = vld [vmem:[#allocation5 + $0x18] sm:$0xff]
    %v91 = vld [vmem:[#allocation5 + $0x20] sm:$0xff]
    %v92 = vld [vmem:[#allocation5 + $0x28] sm:$0xff]
    %v93 = vld [vmem:[#allocation5 + $0x30] sm:$0xff]
    %v94 = vld [vmem:[#allocation5 + $0x38] sm:$0xff]
    %v95 = vld [vmem:[#allocation5 + $0x40] sm:$0xff]
    %v96 = vld [vmem:[#allocation5 + $0x48] sm:$0xff]
    %v97 = vld [vmem:[#allocation7 + $0x2] sm:$0x1]
    %v98 = vperm.slane %v97, 0
    %vm99 = vcmask 523264
    %v101 = vsel %vm99, %v87, 0
    %103 = vmatpush.msra.mxu0 0.0
    %104 = vmatpush.msra.mxu0 0.0
    %105 = vmatpush.msra.mxu0 0.0
    %106 = vmatpush.msra.mxu0 0.0
    %107 = vmatpush.msra.mxu0 0.0
    %108 = vmatpush.msra.mxu0 0.0
    %109 = vmatpush.msra.mxu0 0.0
    %110 = vmatpush.msra.mxu0 0.0
    %111 = vmatpush.msra.mxu0 %v96
    %112 = vmatpush.msra.mxu0 %v95
    %113 = vmatpush.msra.mxu0 %v94
    %114 = vmatpush.msra.mxu0 %v93
    %115 = vmatpush.msra.mxu0 %v92
    %116 = vmatpush.msra.mxu0 %v91
    %117 = vmatpush.msra.mxu0 %v90
    %118 = vmatpush.msra.mxu0 %v89
    %119 = vmatmul.f32.gmra.mxu0 %v101
    %v120 = vpop.f32.mrf.mxu0
    %v121 = vadd.f32 %v98, %v120
    %122 = vdwg.mxu0
    %v123 = vxor.u32 %v121, 2147483648
    %v124 = vmul.f32 %v123, 1.442695
    %v125 = vpow.pop %v124
    %v126 = vadd.f32 %v125, 1.0
    %v127 = vrcp.pop %v126
    %v128 = vmul.f32 %v126, %v127
    %v129 = vsub.f32 1.0, %v128
    %v130 = vmul.f32 %v127, %v129
    %v131 = vadd.f32 %v127, %v130
    %vm132 = vweird.f32 %v126
    %vm133 = vweird.f32 %v127
    %vm134 = vmor %vm132, %vm133
    %v135 = vsel %vm134, %v127, %v131
    %v136 = vand.u32 2147483647, %v126
    %vm137 = vcmp.eq.f32.partialorder %v136, 8.507059e+37
    %v138 = vand.u32 %v126, 2147483648
    %v139 = vor.u32 1.1754944e-38, %v138
    %v140 = vsel %vm137, %v139, %v135
    %v141 = vmul.f32 1.0, %v140
    %142 = vrot.lane.b32.xlu0 %v87, 96
    %v143 = vpop.permute.xlu0 %142
    %v145 = vsub.f32 %v87, %v143
    %v146 = vmul.f32 %v141, %v145
    %148 = vrot.lane.b32.xlu0 %v146, 32
    %v149 = vpop.permute.xlu0 %148
    %v151 = vadd.f32 %v87, %v149
    %v152 = vld [vmem:[#allocation5 + $0x50] sm:$0xff]
    %v153 = vld [vmem:[#allocation5 + $0x58] sm:$0xff]
    %v154 = vld [vmem:[#allocation5 + $0x60] sm:$0xff]
    %v155 = vld [vmem:[#allocation5 + $0x68] sm:$0xff]
    %v156 = vld [vmem:[#allocation7 + $0x3] sm:$0x1]
    %v157 = vperm.slane %v156, 0
    %159 = vrot.lane.b32.xlu0 %v151, 96
    %v160 = vpop.permute.xlu0 %159
    %vm161 = vcmask 261120
    %v162 = vsel %vm161, %v160, 0
    %164 = vmatpush.msra.mxu0 0.0
    %165 = vmatpush.msra.mxu0 0.0
    %166 = vmatpush.msra.mxu0 0.0
    %167 = vmatpush.msra.mxu0 0.0
    %168 = vmatpush.msra.mxu0 0.0
    %169 = vmatpush.msra.mxu0 0.0
    %170 = vmatpush.msra.mxu0 0.0
    %171 = vmatpush.msra.mxu0 0.0
    %172 = vmatpush.msra.mxu0 0.0
    %173 = vmatpush.msra.mxu0 0.0
    %174 = vmatpush.msra.mxu0 0.0
    %175 = vmatpush.msra.mxu0 0.0
    %176 = vmatpush.msra.mxu0 %v155
    %177 = vmatpush.msra.mxu0 %v154
    %178 = vmatpush.msra.mxu0 %v153
    %179 = vmatpush.msra.mxu0 %v152
    %180 = vmatmul.f32.gmra.mxu0 %v162
    %v181 = vpop.f32.mrf.mxu0
    %v182 = vadd.f32 %v157, %v181
    %183 = vdwg.mxu0
    %185 = vrot.lane.b32.xlu0 %v182, 32
    %v186 = vpop.permute.xlu0 %185
    %v188 = vadd.f32 %v151, %v186
    %190 = vrot.lane.b32.xlu0 %v188, 96
    %v191 = vpop.permute.xlu0 %190
    %vm193 = vcmask 257024
    %v194 = vsel %vm193, %v191, 0.0
    %195 = vadd.xlane.f32.xlu0 %v194
    %v196 = vpop.xlane.xlu0 %195
    %v197 = vrcp.pop 32.0
    %v198 = vmul.f32 32.0, %v197
    %v199 = vsub.f32 1.0, %v198
    %v200 = vmul.f32 %v197, %v199
    %v201 = vadd.f32 %v197, %v200
    %vm202 = vweird.f32 %v197
    %v203 = vsel %vm202, %v197, %v201
    %v204 = vmul.f32 %v196, %v203
    %v205 = vsub.f32 %v188, %v204
    %v206 = vmul.f32 %v205, %v205
    %208 = vrot.lane.b32.xlu0 %v206, 96
    %v209 = vpop.permute.xlu0 %208
    %v211 = vsel %vm193, %v209, 0.0
    %212 = vadd.xlane.f32.xlu0 %v211
    %v213 = vpop.xlane.xlu0 %212
    %v214 = vmul.f32 %v213, %v203
    %v215 = vadd.f32 %v214, 1e-05
    %v216 = vrsqrt.pop %v215
    %v217 = vmul.f32 %v216, %v215
    %v218 = vmul.f32 %v217, %v216
    %v219 = vmul.f32 0.5, %v218
    %v220 = vsub.f32 1.5, %v219
    %v221 = vmul.f32 %v216, %v220
    %vm222 = vweird.f32 %v215
    %vm223 = vweird.f32 %v216
    %vm224 = vmor %vm222, %vm223
    %v225 = vsel %vm224, %v216, %v221
    %v226 = vmul.f32 %v205, %v225
    %v227 = vld [vmem:[#allocation7 + $0x4] sm:$0x1]
    %v228 = vperm.slane %v227, 0
    %230 = vrot.lane.b32.xlu0 %v228, 32
    %v231 = vpop.permute.xlu0 %230
    %v233 = vmul.f32 %v226, %v231
    %v234 = vld [vmem:[#allocation7 + $0x5] sm:$0x1]
    %v235 = vperm.slane %v234, 0
    %237 = vrot.lane.b32.xlu0 %v235, 32
    %v238 = vpop.permute.xlu0 %237
    %v240 = vadd.f32 %v233, %v238
    %v241 = vld [vmem:[#allocation5 + $0x70] sm:$0xff]
    %v242 = vld [vmem:[#allocation5 + $0x78] sm:$0xff]
    %v243 = vld [vmem:[#allocation5 + $0x80] sm:$0xff]
    %v244 = vld [vmem:[#allocation5 + $0x88] sm:$0xff]
    %v245 = vld [vmem:[#allocation7 + $0x6] sm:$0x1]
    %v246 = vperm.slane %v245, 0
    %248 = vrot.lane.b32.xlu0 %v240, 96
    %v249 = vpop.permute.xlu0 %248
    %v250 = vsel %vm161, %v249, 0
    %252 = vmatpush.msra.mxu0 0.0
    %253 = vmatpush.msra.mxu0 0.0
    %254 = vmatpush.msra.mxu0 0.0
    %255 = vmatpush.msra.mxu0 0.0
    %256 = vmatpush.msra.mxu0 0.0
    %257 = vmatpush.msra.mxu0 0.0
    %258 = vmatpush.msra.mxu0 0.0
    %259 = vmatpush.msra.mxu0 0.0
    %260 = vmatpush.msra.mxu0 0.0
    %261 = vmatpush.msra.mxu0 0.0
    %262 = vmatpush.msra.mxu0 0.0
    %263 = vmatpush.msra.mxu0 0.0
    %264 = vmatpush.msra.mxu0 %v244
    %265 = vmatpush.msra.mxu0 %v243
    %266 = vmatpush.msra.mxu0 %v242
    %267 = vmatpush.msra.mxu0 %v241
    %268 = vmatmul.f32.gmra.mxu0 %v250
    %v269 = vpop.f32.mrf.mxu0
    %v270 = vadd.f32 %v246, %v269
    %271 = vdwg.mxu0
    %v272 = vmax.f32 %v270, 0.0
    %v273 = vld [vmem:[#allocation5 + $0x90] sm:$0xff]
    %v274 = vld [vmem:[#allocation5 + $0x98] sm:$0xff]
    %v275 = vld [vmem:[#allocation5 + $0xa0] sm:$0xff]
    %v276 = vld [vmem:[#allocation5 + $0xa8] sm:$0xff]
    %v277 = vld [vmem:[#allocation5 + $0xb0] sm:$0xff]
    %v278 = vld [vmem:[#allocation5 + $0xb8] sm:$0xff]
    %v279 = vld [vmem:[#allocation5 + $0xc0] sm:$0xff]
    %v280 = vld [vmem:[#allocation5 + $0xc8] sm:$0xff]
    %v281 = vld [vmem:[#allocation7 + $0x7] sm:$0x1]
    %v282 = vperm.slane %v281, 0
    %v284 = vsel %vm99, %v272, 0
    %286 = vmatpush.msra.mxu0 0.0
    %287 = vmatpush.msra.mxu0 0.0
    %288 = vmatpush.msra.mxu0 0.0
    %289 = vmatpush.msra.mxu0 0.0
    %290 = vmatpush.msra.mxu0 0.0
    %291 = vmatpush.msra.mxu0 0.0
    %292 = vmatpush.msra.mxu0 0.0
    %293 = vmatpush.msra.mxu0 0.0
    %294 = vmatpush.msra.mxu0 %v280
    %295 = vmatpush.msra.mxu0 %v279
    %296 = vmatpush.msra.mxu0 %v278
    %297 = vmatpush.msra.mxu0 %v277
    %298 = vmatpush.msra.mxu0 %v276
    %299 = vmatpush.msra.mxu0 %v275
    %300 = vmatpush.msra.mxu0 %v274
    %301 = vmatpush.msra.mxu0 %v273
    %302 = vmatmul.f32.gmra.mxu0 %v284
    %v303 = vpop.f32.mrf.mxu0
    %v304 = vadd.f32 %v282, %v303
    %305 = vdwg.mxu0
    %307 = vrot.lane.b32.xlu0 %v304, 32
    %v308 = vpop.permute.xlu0 %307
    %v310 = vadd.f32 %v240, %v308
    %312 = vrot.lane.b32.xlu0 %v310, 96
    %v313 = vpop.permute.xlu0 %312
    %v315 = vsel %vm193, %v313, 0.0
    %316 = vadd.xlane.f32.xlu0 %v315
    %v317 = vpop.xlane.xlu0 %316
    %v318 = vmul.f32 %v317, %v203
    %v319 = vsub.f32 %v310, %v318
    %v320 = vmul.f32 %v319, %v319
    %322 = vrot.lane.b32.xlu0 %v320, 96
    %v323 = vpop.permute.xlu0 %322
    %v325 = vsel %vm193, %v323, 0.0
    %326 = vadd.xlane.f32.xlu0 %v325
    %v327 = vpop.xlane.xlu0 %326
    %v328 = vmul.f32 %v327, %v203
    %v329 = vadd.f32 %v328, 1e-05
    %v330 = vrsqrt.pop %v329
    %v331 = vmul.f32 %v330, %v329
    %v332 = vmul.f32 %v331, %v330
    %v333 = vmul.f32 0.5, %v332
    %v334 = vsub.f32 1.5, %v333
    %v335 = vmul.f32 %v330, %v334
    %vm336 = vweird.f32 %v329
    %vm337 = vweird.f32 %v330
    %vm338 = vmor %vm336, %vm337
    %v339 = vsel %vm338, %v330, %v335
    %v340 = vmul.f32 %v319, %v339
    %v341 = vld [vmem:[#allocation7 + $0x8] sm:$0x1]
    %v342 = vperm.slane %v341, 0
    %344 = vrot.lane.b32.xlu0 %v342, 32
    %v345 = vpop.permute.xlu0 %344
    %v347 = vmul.f32 %v340, %v345
    %v348 = vld [vmem:[#allocation7 + $0x9] sm:$0x1]
    %v349 = vperm.slane %v348, 0
    %351 = vrot.lane.b32.xlu0 %v349, 32
    %v352 = vpop.permute.xlu0 %351
    %v354 = vadd.f32 %v347, %v352
    %v355 = vld [vmem:[#allocation5 + $0xd0] sm:$0xff]
    %v356 = vld [vmem:[#allocation5 + $0xd8] sm:$0xff]
    %v357 = vld [vmem:[#allocation5 + $0xe0] sm:$0xff]
    %v358 = vld [vmem:[#allocation5 + $0xe8] sm:$0xff]
    %v359 = vld [vmem:[#allocation7 + $0xa] sm:$0x1]
    %v360 = vperm.slane %v359, 0
    %362 = vrot.lane.b32.xlu0 %v354, 96
    %v363 = vpop.permute.xlu0 %362
    %v364 = vsel %vm161, %v363, 0
    %366 = vmatpush.msra.mxu0 0.0
    %367 = vmatpush.msra.mxu0 0.0
    %368 = vmatpush.msra.mxu0 0.0
    %369 = vmatpush.msra.mxu0 0.0
    %370 = vmatpush.msra.mxu0 0.0
    %371 = vmatpush.msra.mxu0 0.0
    %372 = vmatpush.msra.mxu0 0.0
    %373 = vmatpush.msra.mxu0 0.0
    %374 = vmatpush.msra.mxu0 0.0
    %375 = vmatpush.msra.mxu0 0.0
    %376 = vmatpush.msra.mxu0 0.0
    %377 = vmatpush.msra.mxu0 0.0
    %378 = vmatpush.msra.mxu0 %v358
    %379 = vmatpush.msra.mxu0 %v357
    %380 = vmatpush.msra.mxu0 %v356
    %381 = vmatpush.msra.mxu0 %v355
    %382 = vmatmul.f32.gmra.mxu0 %v364
    %v383 = vpop.f32.mrf.mxu0
    %v384 = vadd.f32 %v360, %v383
    %385 = vdwg.mxu0
    %387 = vrot.lane.b32.xlu0 %v384, 32
    %v388 = vpop.permute.xlu0 %387
    %v390 = vadd.f32 %v354, %v388
    %392 = vrot.lane.b32.xlu0 %v390, 96
    %v393 = vpop.permute.xlu0 %392
    %v395 = vsel %vm193, %v393, 0.0
    %396 = vadd.xlane.f32.xlu0 %v395
    %v397 = vpop.xlane.xlu0 %396
    %v398 = vmul.f32 %v397, %v203
    %v399 = vsub.f32 %v390, %v398
    %v400 = vmul.f32 %v399, %v399
    %402 = vrot.lane.b32.xlu0 %v400, 96
    %v403 = vpop.permute.xlu0 %402
    %v405 = vsel %vm193, %v403, 0.0
    %406 = vadd.xlane.f32.xlu0 %v405
    %v407 = vpop.xlane.xlu0 %406
    %v408 = vmul.f32 %v407, %v203
    %v409 = vadd.f32 %v408, 1e-05
    %v410 = vrsqrt.pop %v409
    %v411 = vmul.f32 %v410, %v409
    %v412 = vmul.f32 %v411, %v410
    %v413 = vmul.f32 0.5, %v412
    %v414 = vsub.f32 1.5, %v413
    %v415 = vmul.f32 %v410, %v414
    %vm416 = vweird.f32 %v409
    %vm417 = vweird.f32 %v410
    %vm418 = vmor %vm416, %vm417
    %v419 = vsel %vm418, %v410, %v415
    %v420 = vmul.f32 %v399, %v419
    %v421 = vld [vmem:[#allocation7 + $0xb] sm:$0x1]
    %v422 = vperm.slane %v421, 0
    %424 = vrot.lane.b32.xlu0 %v422, 32
    %v425 = vpop.permute.xlu0 %424
    %v427 = vmul.f32 %v420, %v425
    %v428 = vld [vmem:[#allocation7 + $0xc] sm:$0x1]
    %v429 = vperm.slane %v428, 0
    %431 = vrot.lane.b32.xlu0 %v429, 32
    %v432 = vpop.permute.xlu0 %431
    %v434 = vadd.f32 %v427, %v432
    %v435 = vld [vmem:[#allocation5 + $0xf0] sm:$0xff]
    %v436 = vld [vmem:[#allocation5 + $0xf8] sm:$0xff]
    %v437 = vld [vmem:[#allocation5 + $0x100] sm:$0xff]
    %v438 = vld [vmem:[#allocation5 + $0x108] sm:$0xff]
    %v439 = vld [vmem:[#allocation7 + $0xd] sm:$0x1]
    %v440 = vperm.slane %v439, 0
    %442 = vrot.lane.b32.xlu0 %v434, 96
    %v443 = vpop.permute.xlu0 %442
    %v444 = vsel %vm161, %v443, 0
    %446 = vmatpush.msra.mxu0 0.0
    %447 = vmatpush.msra.mxu0 0.0
    %448 = vmatpush.msra.mxu0 0.0
    %449 = vmatpush.msra.mxu0 0.0
    %450 = vmatpush.msra.mxu0 0.0
    %451 = vmatpush.msra.mxu0 0.0
    %452 = vmatpush.msra.mxu0 0.0
    %453 = vmatpush.msra.mxu0 0.0
    %454 = vmatpush.msra.mxu0 0.0
    %455 = vmatpush.msra.mxu0 0.0
    %456 = vmatpush.msra.mxu0 0.0
    %457 = vmatpush.msra.mxu0 0.0
    %458 = vmatpush.msra.mxu0 %v438
    %459 = vmatpush.msra.mxu0 %v437
    %460 = vmatpush.msra.mxu0 %v436
    %461 = vmatpush.msra.mxu0 %v435
    %462 = vmatmul.f32.gmra.mxu0 %v444
    %v463 = vpop.f32.mrf.mxu0
    %v464 = vadd.f32 %v440, %v463
    %465 = vdwg.mxu0
    %v466 = vmax.f32 %v464, 0.0
    %v467 = vld [vmem:[#allocation5 + $0x110] sm:$0xff]
    %v468 = vld [vmem:[#allocation5 + $0x118] sm:$0xff]
    %v469 = vld [vmem:[#allocation5 + $0x120] sm:$0xff]
    %v470 = vld [vmem:[#allocation5 + $0x128] sm:$0xff]
    %v471 = vld [vmem:[#allocation5 + $0x130] sm:$0xff]
    %v472 = vld [vmem:[#allocation5 + $0x138] sm:$0xff]
    %v473 = vld [vmem:[#allocation5 + $0x140] sm:$0xff]
    %v474 = vld [vmem:[#allocation5 + $0x148] sm:$0xff]
    %v475 = vld [vmem:[#allocation7 + $0xe] sm:$0x1]
    %v476 = vperm.slane %v475, 0
    %v478 = vsel %vm99, %v466, 0
    %480 = vmatpush.msra.mxu0 0.0
    %481 = vmatpush.msra.mxu0 0.0
    %482 = vmatpush.msra.mxu0 0.0
    %483 = vmatpush.msra.mxu0 0.0
    %484 = vmatpush.msra.mxu0 0.0
    %485 = vmatpush.msra.mxu0 0.0
    %486 = vmatpush.msra.mxu0 0.0
    %487 = vmatpush.msra.mxu0 0.0
    %488 = vmatpush.msra.mxu0 %v474
    %489 = vmatpush.msra.mxu0 %v473
    %490 = vmatpush.msra.mxu0 %v472
    %491 = vmatpush.msra.mxu0 %v471
    %492 = vmatpush.msra.mxu0 %v470
    %493 = vmatpush.msra.mxu0 %v469
    %494 = vmatpush.msra.mxu0 %v468
    %495 = vmatpush.msra.mxu0 %v467
    %496 = vmatmul.f32.gmra.mxu0 %v478
    %v497 = vpop.f32.mrf.mxu0
    %v498 = vadd.f32 %v476, %v497
    %499 = vdwg.mxu0
    %501 = vrot.lane.b32.xlu0 %v498, 32
    %v502 = vpop.permute.xlu0 %501
    %v504 = vadd.f32 %v434, %v502
    %506 = vrot.lane.b32.xlu0 %v504, 96
    %v507 = vpop.permute.xlu0 %506
    %v509 = vsel %vm193, %v507, 0.0
    %510 = vadd.xlane.f32.xlu0 %v509
    %v511 = vpop.xlane.xlu0 %510
    %v512 = vmul.f32 %v511, %v203
    %v513 = vsub.f32 %v504, %v512
    %v514 = vmul.f32 %v513, %v513
    %516 = vrot.lane.b32.xlu0 %v514, 96
    %v517 = vpop.permute.xlu0 %516
    %v519 = vsel %vm193, %v517, 0.0
    %520 = vadd.xlane.f32.xlu0 %v519
    %v521 = vpop.xlane.xlu0 %520
    %v522 = vmul.f32 %v521, %v203
    %v523 = vadd.f32 %v522, 1e-05
    %v524 = vrsqrt.pop %v523
    %v525 = vmul.f32 %v524, %v523
    %v526 = vmul.f32 %v525, %v524
    %v527 = vmul.f32 0.5, %v526
    %v528 = vsub.f32 1.5, %v527
    %v529 = vmul.f32 %v524, %v528
    %vm530 = vweird.f32 %v523
    %vm531 = vweird.f32 %v524
    %vm532 = vmor %vm530, %vm531
    %v533 = vsel %vm532, %v524, %v529
    %v534 = vmul.f32 %v513, %v533
    %v535 = vld [vmem:[#allocation7 + $0xf] sm:$0x1]
    %v536 = vperm.slane %v535, 0
    %538 = vrot.lane.b32.xlu0 %v536, 32
    %v539 = vpop.permute.xlu0 %538
    %v541 = vmul.f32 %v534, %v539
    %v542 = vld [vmem:[#allocation7 + $0x10] sm:$0x1]
    %v543 = vperm.slane %v542, 0
    %545 = vrot.lane.b32.xlu0 %v543, 32
    %v546 = vpop.permute.xlu0 %545
    %v548 = vadd.f32 %v541, %v546
    %550 = vrot.lane.b32.xlu0 %v548, 96
    %v551 = vpop.permute.xlu0 %550
    %v553 = vsel %vm193, %v551, 0.0
    %554 = vadd.xlane.f32.xlu0 %v553
    %v555 = vpop.xlane.xlu0 %554
    %v556 = vmul.f32 %v555, %v203
    %v557 = vsub.f32 %v548, %v556
    %v558 = vmul.f32 %v557, %v557
    %560 = vrot.lane.b32.xlu0 %v558, 96
    %v561 = vpop.permute.xlu0 %560
    %v563 = vsel %vm193, %v561, 0.0
    %564 = vadd.xlane.f32.xlu0 %v563
    %v565 = vpop.xlane.xlu0 %564
    %v566 = vmul.f32 %v565, %v203
    %v567 = vadd.f32 %v566, 1e-05
    %v568 = vrsqrt.pop %v567
    %v569 = vmul.f32 %v568, %v567
    %v570 = vmul.f32 %v569, %v568
    %v571 = vmul.f32 0.5, %v570
    %v572 = vsub.f32 1.5, %v571
    %v573 = vmul.f32 %v568, %v572
    %vm574 = vweird.f32 %v567
    %vm575 = vweird.f32 %v568
    %vm576 = vmor %vm574, %vm575
    %v577 = vsel %vm576, %v568, %v573
    %v578 = vmul.f32 %v557, %v577
    %v579 = vld [vmem:[#allocation5 + $0x150] sm:$0xff]
    %v580 = vld [vmem:[#allocation5 + $0x158] sm:$0xff]
    %v581 = vld [vmem:[#allocation5 + $0x160] sm:$0xff]
    %v582 = vld [vmem:[#allocation5 + $0x168] sm:$0xff]
    %v583 = vld [vmem:[#allocation7 + $0x11] sm:$0x1]
    %v584 = vperm.slane %v583, 0
    %586 = vrot.lane.b32.xlu0 %v578, 96
    %v587 = vpop.permute.xlu0 %586
    %v588 = vsel %vm161, %v587, 0
    %590 = vmatpush.msra.mxu0 0.0
    %591 = vmatpush.msra.mxu0 0.0
    %592 = vmatpush.msra.mxu0 0.0
    %593 = vmatpush.msra.mxu0 0.0
    %594 = vmatpush.msra.mxu0 0.0
    %595 = vmatpush.msra.mxu0 0.0
    %596 = vmatpush.msra.mxu0 0.0
    %597 = vmatpush.msra.mxu0 0.0
    %598 = vmatpush.msra.mxu0 0.0
    %599 = vmatpush.msra.mxu0 0.0
    %600 = vmatpush.msra.mxu0 0.0
    %601 = vmatpush.msra.mxu0 0.0
    %602 = vmatpush.msra.mxu0 %v582
    %603 = vmatpush.msra.mxu0 %v581
    %604 = vmatpush.msra.mxu0 %v580
    %605 = vmatpush.msra.mxu0 %v579
    %606 = vmatmul.f32.gmra.mxu0 %v588
    %v607 = vpop.f32.mrf.mxu0
    %v608 = vadd.f32 %v584, %v607
    %609 = vdwg.mxu0
    %v610 = vld [vmem:[#allocation7 + $0x1] sm:$0x1]
    %v611 = vld [vmem:[#allocation5 + $0x170] sm:$0xff]
    %v612 = vld [vmem:[#allocation5 + $0x178] sm:$0xff]
    %v613 = vld [vmem:[#allocation5 + $0x180] sm:$0xff]
    %v614 = vld [vmem:[#allocation5 + $0x188] sm:$0xff]
    %v615 = vld [vmem:[#allocation7 + $0x12] sm:$0x1]
    %v617 = vsel %vm161, %v610, 0
    %619 = vmatpush.msra.mxu0 0.0
    %620 = vmatpush.msra.mxu0 0.0
    %621 = vmatpush.msra.mxu0 0.0
    %622 = vmatpush.msra.mxu0 0.0
    %623 = vmatpush.msra.mxu0 0.0
    %624 = vmatpush.msra.mxu0 0.0
    %625 = vmatpush.msra.mxu0 0.0
    %626 = vmatpush.msra.mxu0 0.0
    %627 = vmatpush.msra.mxu0 0.0
    %628 = vmatpush.msra.mxu0 0.0
    %629 = vmatpush.msra.mxu0 0.0
    %630 = vmatpush.msra.mxu0 0.0
    %631 = vmatpush.msra.mxu0 %v614
    %632 = vmatpush.msra.mxu0 %v613
    %633 = vmatpush.msra.mxu0 %v612
    %634 = vmatpush.msra.mxu0 %v611
    %635 = vmatmul.f32.gmra.mxu0 %v617
    %v636 = vpop.f32.mrf.mxu0
    %v637 = vadd.f32 %v615, %v636
    %638 = vdwg.mxu0
    %v639 = vadd.f32 %v610, %v637
    %vm640 = vcmask 253952
    %v641 = vsel %vm640, %v639, 0.0
    %642 = vadd.xlane.f32.xlu0 %v641
    %v643 = vpop.xlane.xlu0 %642
    %v644 = vmul.f32 %v643, %v203
    %v645 = vsub.f32 %v639, %v644
    %v646 = vmul.f32 %v645, %v645
    %v647 = vsel %vm640, %v646, 0.0
    %648 = vadd.xlane.f32.xlu0 %v647
    %v649 = vpop.xlane.xlu0 %648
    %v650 = vmul.f32 %v649, %v203
    %v651 = vadd.f32 %v650, 1e-05
    %v652 = vrsqrt.pop %v651
    %v653 = vmul.f32 %v652, %v651
    %v654 = vmul.f32 %v653, %v652
    %v655 = vmul.f32 0.5, %v654
    %v656 = vsub.f32 1.5, %v655
    %v657 = vmul.f32 %v652, %v656
    %vm658 = vweird.f32 %v651
    %vm659 = vweird.f32 %v652
    %vm660 = vmor %vm658, %vm659
    %v661 = vsel %vm660, %v652, %v657
    %v662 = vmul.f32 %v645, %v661
    %v663 = vld [vmem:[#allocation7 + $0x13] sm:$0x1]
    %v664 = vmul.f32 %v662, %v663
    %v665 = vld [vmem:[#allocation7 + $0x14] sm:$0x1]
    %v666 = vadd.f32 %v664, %v665
    %v667 = vperm.slane %v666, 0
    %v668 = vadd.f32 %v667, %v608
    %v669 = vsel %vm193, %v668, 0.0
    %670 = vadd.xlane.f32.xlu0 %v669
    %v671 = vpop.xlane.xlu0 %670
    %v672 = vmul.f32 %v671, %v203
    %v673 = vsub.f32 %v668, %v672
    %v674 = vmul.f32 %v673, %v673
    %v675 = vsel %vm193, %v674, 0.0
    %676 = vadd.xlane.f32.xlu0 %v675
    %v677 = vpop.xlane.xlu0 %676
    %v678 = vmul.f32 %v677, %v203
    %v679 = vadd.f32 %v678, 1e-05
    %v680 = vrsqrt.pop %v679
    %v681 = vmul.f32 %v680, %v679
    %v682 = vmul.f32 %v681, %v680
    %v683 = vmul.f32 0.5, %v682
    %v684 = vsub.f32 1.5, %v683
    %v685 = vmul.f32 %v680, %v684
    %vm686 = vweird.f32 %v679
    %vm687 = vweird.f32 %v680
    %vm688 = vmor %vm686, %vm687
    %v689 = vsel %vm688, %v680, %v685
    %v690 = vmul.f32 %v673, %v689
    %v691 = vld [vmem:[#allocation7 + $0x15] sm:$0x1]
    %v692 = vperm.slane %v691, 0
    %v693 = vmul.f32 %v690, %v692
    %v694 = vld [vmem:[#allocation7 + $0x16] sm:$0x1]
    %v695 = vperm.slane %v694, 0
    %v696 = vadd.f32 %v693, %v695
    %v697 = vld [vmem:[#allocation5 + $0x190] sm:$0xff]
    %v698 = vld [vmem:[#allocation5 + $0x198] sm:$0xff]
    %v699 = vld [vmem:[#allocation5 + $0x1a0] sm:$0xff]
    %v700 = vld [vmem:[#allocation5 + $0x1a8] sm:$0xff]
    %v701 = vld [vmem:[#allocation7 + $0x17] sm:$0x1]
    %v702 = vperm.slane %v701, 0
    %v704 = vsel %vm161, %v696, 0
    %706 = vmatpush.msra.mxu0 0.0
    %707 = vmatpush.msra.mxu0 0.0
    %708 = vmatpush.msra.mxu0 0.0
    %709 = vmatpush.msra.mxu0 0.0
    %710 = vmatpush.msra.mxu0 0.0
    %711 = vmatpush.msra.mxu0 0.0
    %712 = vmatpush.msra.mxu0 0.0
    %713 = vmatpush.msra.mxu0 0.0
    %714 = vmatpush.msra.mxu0 0.0
    %715 = vmatpush.msra.mxu0 0.0
    %716 = vmatpush.msra.mxu0 0.0
    %717 = vmatpush.msra.mxu0 0.0
    %718 = vmatpush.msra.mxu0 %v700
    %719 = vmatpush.msra.mxu0 %v699
    %720 = vmatpush.msra.mxu0 %v698
    %721 = vmatpush.msra.mxu0 %v697
    %722 = vmatmul.f32.gmra.mxu0 %v704
    %v723 = vpop.f32.mrf.mxu0
    %v724 = vadd.f32 %v702, %v723
    %725 = vdwg.mxu0
    %v726 = vmax.f32 %v724, 0.0
    %v727 = vld [vmem:[#allocation5 + $0x1b0] sm:$0xff]
    %v728 = vld [vmem:[#allocation5 + $0x1b8] sm:$0xff]
    %v729 = vld [vmem:[#allocation5 + $0x1c0] sm:$0xff]
    %v730 = vld [vmem:[#allocation5 + $0x1c8] sm:$0xff]
    %v731 = vld [vmem:[#allocation5 + $0x1d0] sm:$0xff]
    %v732 = vld [vmem:[#allocation5 + $0x1d8] sm:$0xff]
    %v733 = vld [vmem:[#allocation5 + $0x1e0] sm:$0xff]
    %v734 = vld [vmem:[#allocation5 + $0x1e8] sm:$0xff]
    %v735 = vld [vmem:[#allocation7 + $0x18] sm:$0x1]
    %v736 = vperm.slane %v735, 0
    %v738 = vsel %vm99, %v726, 0
    %740 = vmatpush.msra.mxu0 0.0
    %741 = vmatpush.msra.mxu0 0.0
    %742 = vmatpush.msra.mxu0 0.0
    %743 = vmatpush.msra.mxu0 0.0
    %744 = vmatpush.msra.mxu0 0.0
    %745 = vmatpush.msra.mxu0 0.0
    %746 = vmatpush.msra.mxu0 0.0
    %747 = vmatpush.msra.mxu0 0.0
    %748 = vmatpush.msra.mxu0 %v734
    %749 = vmatpush.msra.mxu0 %v733
    %750 = vmatpush.msra.mxu0 %v732
    %751 = vmatpush.msra.mxu0 %v731
    %752 = vmatpush.msra.mxu0 %v730
    %753 = vmatpush.msra.mxu0 %v729
    %754 = vmatpush.msra.mxu0 %v728
    %755 = vmatpush.msra.mxu0 %v727
    %756 = vmatmul.f32.gmra.mxu0 %v738
    %v757 = vpop.f32.mrf.mxu0
    %v758 = vadd.f32 %v736, %v757
    %759 = vdwg.mxu0
    %v760 = vadd.f32 %v696, %v758
    %v761 = vsel %vm193, %v760, 0.0
    %762 = vadd.xlane.f32.xlu0 %v761
    %v763 = vpop.xlane.xlu0 %762
    %v764 = vmul.f32 %v763, %v203
    %v765 = vsub.f32 %v760, %v764
    %v766 = vmul.f32 %v765, %v765
    %v767 = vsel %vm193, %v766, 0.0
    %768 = vadd.xlane.f32.xlu0 %v767
    %v769 = vpop.xlane.xlu0 %768
    %v770 = vmul.f32 %v769, %v203
    %v771 = vadd.f32 %v770, 1e-05
    %v772 = vrsqrt.pop %v771
    %v773 = vmul.f32 %v772, %v771
    %v774 = vmul.f32 %v773, %v772
    %v775 = vmul.f32 0.5, %v774
    %v776 = vsub.f32 1.5, %v775
    %v777 = vmul.f32 %v772, %v776
    %vm778 = vweird.f32 %v771
    %vm779 = vweird.f32 %v772
    %vm780 = vmor %vm778, %vm779
    %v781 = vsel %vm780, %v772, %v777
    %v782 = vmul.f32 %v765, %v781
    %v783 = vld [vmem:[#allocation7 + $0x19] sm:$0x1]
    %v784 = vperm.slane %v783, 0
    %v785 = vmul.f32 %v782, %v784
    %v786 = vld [vmem:[#allocation7 + $0x1a] sm:$0x1]
    %v787 = vperm.slane %v786, 0
    %v788 = vadd.f32 %v785, %v787
    %v789 = vld [vmem:[#allocation5 + $0x1f0] sm:$0xff]
    %v790 = vld [vmem:[#allocation5 + $0x1f8] sm:$0xff]
    %v791 = vld [vmem:[#allocation5 + $0x200] sm:$0xff]
    %v792 = vld [vmem:[#allocation5 + $0x208] sm:$0xff]
    %v793 = vld [vmem:[#allocation7 + $0x1b] sm:$0x1]
    %v794 = vperm.slane %v793, 0
    %v796 = vsel %vm161, %v788, 0
    %798 = vmatpush.msra.mxu0 0.0
    %799 = vmatpush.msra.mxu0 0.0
    %800 = vmatpush.msra.mxu0 0.0
    %801 = vmatpush.msra.mxu0 0.0
    %802 = vmatpush.msra.mxu0 0.0
    %803 = vmatpush.msra.mxu0 0.0
    %804 = vmatpush.msra.mxu0 0.0
    %805 = vmatpush.msra.mxu0 0.0
    %806 = vmatpush.msra.mxu0 0.0
    %807 = vmatpush.msra.mxu0 0.0
    %808 = vmatpush.msra.mxu0 0.0
    %809 = vmatpush.msra.mxu0 0.0
    %810 = vmatpush.msra.mxu0 %v792
    %811 = vmatpush.msra.mxu0 %v791
    %812 = vmatpush.msra.mxu0 %v790
    %813 = vmatpush.msra.mxu0 %v789
    %814 = vmatmul.f32.gmra.mxu0 %v796
    %v815 = vpop.f32.mrf.mxu0
    %v816 = vadd.f32 %v794, %v815
    %817 = vdwg.mxu0
    %v818 = vadd.f32 %v788, %v816
    %v819 = vsel %vm193, %v818, 0.0
    %820 = vadd.xlane.f32.xlu0 %v819
    %v821 = vpop.xlane.xlu0 %820
    %v822 = vmul.f32 %v821, %v203
    %v823 = vsub.f32 %v818, %v822
    %v824 = vmul.f32 %v823, %v823
    %v825 = vsel %vm193, %v824, 0.0
    %826 = vadd.xlane.f32.xlu0 %v825
    %v827 = vpop.xlane.xlu0 %826
    %v828 = vmul.f32 %v827, %v203
    %v829 = vadd.f32 %v828, 1e-05
    %v830 = vrsqrt.pop %v829
    %v831 = vmul.f32 %v830, %v829
    %v832 = vmul.f32 %v831, %v830
    %v833 = vmul.f32 0.5, %v832
    %v834 = vsub.f32 1.5, %v833
    %v835 = vmul.f32 %v830, %v834
    %vm836 = vweird.f32 %v829
    %vm837 = vweird.f32 %v830
    %vm838 = vmor %vm836, %vm837
    %v839 = vsel %vm838, %v830, %v835
    %v840 = vmul.f32 %v823, %v839
    %v841 = vld [vmem:[#allocation7 + $0x1c] sm:$0x1]
    %v842 = vperm.slane %v841, 0
    %v843 = vmul.f32 %v840, %v842
    %v844 = vld [vmem:[#allocation7 + $0x1d] sm:$0x1]
    %v845 = vperm.slane %v844, 0
    %v846 = vadd.f32 %v843, %v845
    %848 = vrot.lane.b32.xlu0 %v608, 96
    %v849 = vpop.permute.xlu0 %848
    %v851 = vadd.f32 %v846, %v849
    %v852 = vsel %vm193, %v851, 0.0
    %853 = vadd.xlane.f32.xlu0 %v852
    %v854 = vpop.xlane.xlu0 %853
    %v855 = vmul.f32 %v854, %v203
    %v856 = vsub.f32 %v851, %v855
    %v857 = vmul.f32 %v856, %v856
    %v858 = vsel %vm193, %v857, 0.0
    %859 = vadd.xlane.f32.xlu0 %v858
    %v860 = vpop.xlane.xlu0 %859
    %v861 = vmul.f32 %v860, %v203
    %v862 = vadd.f32 %v861, 1e-05
    %v863 = vrsqrt.pop %v862
    %v864 = vmul.f32 %v863, %v862
    %v865 = vmul.f32 %v864, %v863
    %v866 = vmul.f32 0.5, %v865
    %v867 = vsub.f32 1.5, %v866
    %v868 = vmul.f32 %v863, %v867
    %vm869 = vweird.f32 %v862
    %vm870 = vweird.f32 %v863
    %vm871 = vmor %vm869, %vm870
    %v872 = vsel %vm871, %v863, %v868
    %v873 = vmul.f32 %v856, %v872
    %v874 = vld [vmem:[#allocation7 + $0x1e] sm:$0x1]
    %v875 = vperm.slane %v874, 0
    %v876 = vmul.f32 %v873, %v875
    %v877 = vld [vmem:[#allocation7 + $0x1f] sm:$0x1]
    %v878 = vperm.slane %v877, 0
    %v879 = vadd.f32 %v876, %v878
    %v880 = vld [vmem:[#allocation5 + $0x210] sm:$0xff]
    %v881 = vld [vmem:[#allocation5 + $0x218] sm:$0xff]
    %v882 = vld [vmem:[#allocation5 + $0x220] sm:$0xff]
    %v883 = vld [vmem:[#allocation5 + $0x228] sm:$0xff]
    %v884 = vld [vmem:[#allocation7 + $0x20] sm:$0x1]
    %v885 = vperm.slane %v884, 0
    %v887 = vsel %vm161, %v879, 0
    %889 = vmatpush.msra.mxu0 0.0
    %890 = vmatpush.msra.mxu0 0.0
    %891 = vmatpush.msra.mxu0 0.0
    %892 = vmatpush.msra.mxu0 0.0
    %893 = vmatpush.msra.mxu0 0.0
    %894 = vmatpush.msra.mxu0 0.0
    %895 = vmatpush.msra.mxu0 0.0
    %896 = vmatpush.msra.mxu0 0.0
    %897 = vmatpush.msra.mxu0 0.0
    %898 = vmatpush.msra.mxu0 0.0
    %899 = vmatpush.msra.mxu0 0.0
    %900 = vmatpush.msra.mxu0 0.0
    %901 = vmatpush.msra.mxu0 %v883
    %902 = vmatpush.msra.mxu0 %v882
    %903 = vmatpush.msra.mxu0 %v881
    %904 = vmatpush.msra.mxu0 %v880
    %905 = vmatmul.f32.gmra.mxu0 %v887
    %v906 = vpop.f32.mrf.mxu0
    %v907 = vadd.f32 %v885, %v906
    %908 = vdwg.mxu0
    %v909 = vmax.f32 %v907, 0.0
    %v910 = vld [vmem:[#allocation5 + $0x230] sm:$0xff]
    %v911 = vld [vmem:[#allocation5 + $0x238] sm:$0xff]
    %v912 = vld [vmem:[#allocation5 + $0x240] sm:$0xff]
    %v913 = vld [vmem:[#allocation5 + $0x248] sm:$0xff]
    %v914 = vld [vmem:[#allocation5 + $0x250] sm:$0xff]
    %v915 = vld [vmem:[#allocation5 + $0x258] sm:$0xff]
    %v916 = vld [vmem:[#allocation5 + $0x260] sm:$0xff]
    %v917 = vld [vmem:[#allocation5 + $0x268] sm:$0xff]
    %v918 = vld [vmem:[#allocation7 + $0x21] sm:$0x1]
    %v919 = vperm.slane %v918, 0
    %v921 = vsel %vm99, %v909, 0
    %923 = vmatpush.msra.mxu0 0.0
    %924 = vmatpush.msra.mxu0 0.0
    %925 = vmatpush.msra.mxu0 0.0
    %926 = vmatpush.msra.mxu0 0.0
    %927 = vmatpush.msra.mxu0 0.0
    %928 = vmatpush.msra.mxu0 0.0
    %929 = vmatpush.msra.mxu0 0.0
    %930 = vmatpush.msra.mxu0 0.0
    %931 = vmatpush.msra.mxu0 %v917
    %932 = vmatpush.msra.mxu0 %v916
    %933 = vmatpush.msra.mxu0 %v915
    %934 = vmatpush.msra.mxu0 %v914
    %935 = vmatpush.msra.mxu0 %v913
    %936 = vmatpush.msra.mxu0 %v912
    %937 = vmatpush.msra.mxu0 %v911
    %938 = vmatpush.msra.mxu0 %v910
    %939 = vmatmul.f32.gmra.mxu0 %v921
    %v940 = vpop.f32.mrf.mxu0
    %v941 = vadd.f32 %v919, %v940
    %942 = vdwg.mxu0
    %v943 = vadd.f32 %v879, %v941
    %v944 = vsel %vm193, %v943, 0.0
    %945 = vadd.xlane.f32.xlu0 %v944
    %v946 = vpop.xlane.xlu0 %945
    %v947 = vmul.f32 %v946, %v203
    %v948 = vsub.f32 %v943, %v947
    %v949 = vmul.f32 %v948, %v948
    %v950 = vsel %vm193, %v949, 0.0
    %951 = vadd.xlane.f32.xlu0 %v950
    %v952 = vpop.xlane.xlu0 %951
    %v953 = vmul.f32 %v952, %v203
    %v954 = vadd.f32 %v953, 1e-05
    %v955 = vrsqrt.pop %v954
    %v956 = vmul.f32 %v955, %v954
    %v957 = vmul.f32 %v956, %v955
    %v958 = vmul.f32 0.5, %v957
    %v959 = vsub.f32 1.5, %v958
    %v960 = vmul.f32 %v955, %v959
    %vm961 = vweird.f32 %v954
    %vm962 = vweird.f32 %v955
    %vm963 = vmor %vm961, %vm962
    %v964 = vsel %vm963, %v955, %v960
    %v965 = vmul.f32 %v948, %v964
    %v966 = vld [vmem:[#allocation7 + $0x22] sm:$0x1]
    %v967 = vperm.slane %v966, 0
    %v968 = vmul.f32 %v965, %v967
    %v969 = vld [vmem:[#allocation7 + $0x23] sm:$0x1]
    %v970 = vperm.slane %v969, 0
    %v971 = vadd.f32 %v968, %v970
    %v972 = vsel %vm193, %v971, 0.0
    %973 = vadd.xlane.f32.xlu0 %v972
    %v974 = vpop.xlane.xlu0 %973
    %v975 = vmul.f32 %v974, %v203
    %v976 = vsub.f32 %v971, %v975
    %v977 = vmul.f32 %v976, %v976
    %v978 = vsel %vm193, %v977, 0.0
    %979 = vadd.xlane.f32.xlu0 %v978
    %v980 = vpop.xlane.xlu0 %979
    %v981 = vmul.f32 %v980, %v203
    %v982 = vadd.f32 %v981, 1e-05
    %v983 = vrsqrt.pop %v982
    %v984 = vmul.f32 %v983, %v982
    %v985 = vmul.f32 %v984, %v983
    %v986 = vmul.f32 0.5, %v985
    %v987 = vsub.f32 1.5, %v986
    %v988 = vmul.f32 %v983, %v987
    %vm989 = vweird.f32 %v982
    %vm990 = vweird.f32 %v983
    %vm991 = vmor %vm989, %vm990
    %v992 = vsel %vm991, %v983, %v988
    %v993 = vmul.f32 %v976, %v992
    %v994 = vld [vmem:[#allocation5 + $0x270] sm:$0xff]
    %v995 = vld [vmem:[#allocation5 + $0x278] sm:$0xff]
    %v996 = vld [vmem:[#allocation5 + $0x280] sm:$0xff]
    %v997 = vld [vmem:[#allocation5 + $0x288] sm:$0xff]
    %v998 = vld [vmem:[#allocation7 + $0x24] sm:$0x1]
    %v999 = vperm.slane %v998, 0
    %v1001 = vsel %vm161, %v993, 0
    %1003 = vmatpush.msra.mxu0 0.0
    %1004 = vmatpush.msra.mxu0 0.0
    %1005 = vmatpush.msra.mxu0 0.0
    %1006 = vmatpush.msra.mxu0 0.0
    %1007 = vmatpush.msra.mxu0 0.0
    %1008 = vmatpush.msra.mxu0 0.0
    %1009 = vmatpush.msra.mxu0 0.0
    %1010 = vmatpush.msra.mxu0 0.0
    %1011 = vmatpush.msra.mxu0 0.0
    %1012 = vmatpush.msra.mxu0 0.0
    %1013 = vmatpush.msra.mxu0 0.0
    %1014 = vmatpush.msra.mxu0 0.0
    %1015 = vmatpush.msra.mxu0 %v997
    %1016 = vmatpush.msra.mxu0 %v996
    %1017 = vmatpush.msra.mxu0 %v995
    %1018 = vmatpush.msra.mxu0 %v994
    %1019 = vmatmul.f32.gmra.mxu0 %v1001
    %v1020 = vpop.f32.mrf.mxu0
    %v1021 = vadd.f32 %v999, %v1020
    %1022 = vdwg.mxu0
    %vm1023 = vcmask 27648
    %1024 = vst.msk [vmem:[#allocation8] sm:$0xf] %vm1023, %v1021
    // Predicated region
    $region26: #{tpu_custom_call.1} parent=1 // pred_check
      _
    $region27: #{tpu_custom_call.1} parent=1 // pred_check_branch
      %1026 = sbr.rel (0) target = $region29
    $region28: #{tpu_custom_call.1} parent=1 // pred_region
      %1028 = vsyncadd [#allocation4], 0
      %s1030 = sshll.u32 [#allocation8], 4
      %s1031 = int_to_ptr.vmem [resolvable:$true] %s1030
      %s1032 = sshll.u32 %s3, 4
      %s1033 = int_to_ptr.hbm [resolvable:$true] %s1032
      %1035 = dma.vmem_to_hbm [thread:$0]  %s1031, 64, %s1033, [#allocation4]
    $region29: #{tpu_custom_call.1} parent=1 // pred_fallthru
      _
    // Predicated region
    $region30: #{tpu_custom_call.1} parent=1 // pred_check
      _
    $region31: #{tpu_custom_call.1} parent=1 // pred_check_branch
      %1037 = sbr.rel (0) target = $region33
    $region32: #{tpu_custom_call.1} parent=1 // pred_region
      %1039 = dma.done [#allocation4], 64
    $region33: #{tpu_custom_call.1} parent=1 // pred_fallthru
      _
    %1040 = vsyncpa [#allocation3], 1
    %1041 = vsyncpa [#allocation6], 1
    %1042 = vsyncpa [#allocation4], 1

</llo_original>
